<compile_context>
chip_gen: v7x
topology: tpu7x:2x2x1
jax: 0.10.0
libtpu: 0.0.40
codegen_flags: <defaults>
</compile_context>

<pallas_src>
import functools
import math

import jax
import jax.numpy as jnp
from jax.experimental import pallas as pl
from jax.experimental.pallas import tpu as pltpu


def encoder_layer_kernel(
    x_ref,                                  # (bb, S, D) f32
    wqkv_ref, bqkv_ref,                     # (D, 3D) bf16, (1, 3D) f32
    wo_ref, bo_ref,                         # (D, D) bf16, (1, D) f32
    g1_ref, be1_ref,                        # (1, D) f32
    w1_ref, b1_ref,                         # (D, d_ff) bf16, (1, d_ff) f32
    w2_ref, b2_ref,                         # (d_ff, D) bf16, (1, D) f32
    g2_ref, be2_ref,                        # (1, D) f32
    o_ref,                                  # (bb, S, D)
    *, num_heads, head_dim, eps=1e-5,
):
    bb, S, D = x_ref.shape
    nh, hd = num_heads, head_dim
    rows = bb * S

    x = x_ref[...]                          # residual path stays f32
    x2 = x.reshape(rows, D)                 # leading-dim collapse only (free)
    x_bf = x2.astype(jnp.bfloat16)          # cast for MXU operands only

    # ---- fused QKV projection: one (rows, D) @ (D, 3D) MXU matmul ----------
    qkv = jnp.dot(x_bf, wqkv_ref[...],
                  preferred_element_type=jnp.float32) + bqkv_ref[...]   # (rows, 3D) f32
    # Q/K/V occupy D-aligned column slabs; 1/sqrt(hd) already folded into Q.
    q = qkv[:, :D].reshape(bb, S, D).astype(jnp.bfloat16)
    k = qkv[:, D:2 * D].reshape(bb, S, D).astype(jnp.bfloat16)
    v = qkv[:, 2 * D:].reshape(bb, S, D).astype(jnp.bfloat16)

    # ---- scaled dot-product attention (per head, batched over batch block) --
    ctx_parts = []
    for h in range(nh):                     # static; scores are inherently per-head
        sl = slice(h * hd, (h + 1) * hd)
        s = jnp.einsum("bqd,bkd->bqk", q[..., sl], k[..., sl],
                       preferred_element_type=jnp.float32)              # (bb, S, S) f32
        s = s - jnp.max(s, axis=-1, keepdims=True)
        p = jnp.exp(s)
        p = p * pl.reciprocal(jnp.sum(p, axis=-1, keepdims=True), approx=True)
        ctx_h = jnp.einsum("bqk,bkd->bqd", p.astype(jnp.bfloat16), v[..., sl],
                           preferred_element_type=jnp.float32)          # (bb, S, hd) f32
        ctx_parts.append(ctx_h)
    ctx = jnp.concatenate(ctx_parts, axis=-1).reshape(rows, D)          # (rows, D) f32

    # ---- output projection: one K=D matmul (no per-head matmuls / head sum) --
    attn = jnp.dot(ctx.astype(jnp.bfloat16), wo_ref[...],
                   preferred_element_type=jnp.float32) + bo_ref[...]

    # ---- residual + LayerNorm 1 (f32) ----
    y = x2 + attn
    mu = jnp.mean(y, axis=-1, keepdims=True)
    yc = y - mu
    var = jnp.mean(yc * yc, axis=-1, keepdims=True)
    y = yc * jax.lax.rsqrt(var + eps) * g1_ref[...] + be1_ref[...]

    # ---- position-wise feed-forward (bf16 matmuls, f32 bias/ReLU) ----
    h1 = jnp.dot(y.astype(jnp.bfloat16), w1_ref[...],
                 preferred_element_type=jnp.float32) + b1_ref[...]
    h1 = jnp.maximum(h1, 0.0)
    ff = jnp.dot(h1.astype(jnp.bfloat16), w2_ref[...],
                 preferred_element_type=jnp.float32) + b2_ref[...]

    # ---- residual + LayerNorm 2 ----
    z = y + ff
    mu2 = jnp.mean(z, axis=-1, keepdims=True)
    zc = z - mu2
    var2 = jnp.mean(zc * zc, axis=-1, keepdims=True)
    z = zc * jax.lax.rsqrt(var2 + eps) * g2_ref[...] + be2_ref[...]

    o_ref[...] = z.reshape(bb, S, D).astype(o_ref.dtype)


def _pick_batch_block(B, S, target_rows=256):
    """~256 MXU rows per step (256x256 MXU on v6e/v7x); the grid is a serial
    loop on single-TC chips, so only force >=2 steps on dual-TC chips (v7x)."""
    bb = max(1, min(B, target_rows // max(S, 1)))
    try:
        kind = jax.devices()[0].device_kind.lower()
    except Exception:  # pragma: no cover - defensive
        kind = ""
    if "v7" in kind and B >= 2:
        bb = min(bb, max(1, B // 2))        # keep >=2 steps for megacore sharding
    while B % bb:
        bb -= 1
    return bb


def encoder_layer(x, params, *, head_dim):
    B, S, D = x.shape
    assert D % head_dim == 0
    nh, hd = D // head_dim, head_dim
    d_ff = params["w1"].shape[-1]
    scale = 1.0 / math.sqrt(hd)

    # ---- host-side weight prep: QKV fusion (D-aligned slabs), scale fold, bf16 ----
    wqkv = jnp.concatenate(
        [params["wq"] * scale, params["wk"], params["wv"]], axis=-1
    ).astype(jnp.bfloat16)                                   # (D, 3D)
    bqkv = jnp.concatenate(
        [params["bq"] * scale, params["bk"], params["bv"]], axis=-1
    ).astype(jnp.float32)                                    # (1, 3D)
    wo = params["wo"].astype(jnp.bfloat16)                   # (D, D) standard layout
    w1 = params["w1"].astype(jnp.bfloat16)
    w2 = params["w2"].astype(jnp.bfloat16)

    bb = _pick_batch_block(B, S)

    def full(shape):
        nd = len(shape)
        # Constant-index (grid-invariant) weight blocks.  At production sizes
        # mark these pipeline_mode=pl.Buffered(1): double-buffering a block
        # whose index never changes only wastes VMEM.
        return pl.BlockSpec(shape, lambda b, nd=nd: (0,) * nd)

    in_specs = [
        pl.BlockSpec((bb, S, D), lambda b: (b, 0, 0)),       # x, tiled over batch blocks
        full((D, 3 * D)), full((1, 3 * D)),                  # fused Wqkv, bqkv
        full((D, D)), full((1, D)),                          # Wo, bo
        full((1, D)), full((1, D)),                          # ln1 gamma, beta
        full((D, d_ff)), full((1, d_ff)),                    # W1, b1
        full((d_ff, D)), full((1, D)),                       # W2, b2
        full((1, D)), full((1, D)),                          # ln2 gamma, beta
    ]

    # advisory cost estimate so XLA schedules surrounding ops around this call
    flops = int(
        2 * B * S * D * (3 * D)            # QKV projection
        + 4 * B * nh * S * S * hd          # scores + PV
        + 2 * B * S * D * D                # output projection
        + 4 * B * S * D * d_ff             # FFN (two matmuls)
    )
    transcendentals = int(B * nh * S * S + 2 * B * S)        # exp + rsqrt
    bytes_accessed = int(
        2 * B * S * D * 4                                      # x in + out (f32)
        + (3 * D * D + D * D + 2 * D * d_ff) * 2               # bf16 weights
        + (3 * D + 2 * D + d_ff + 4 * D) * 4                   # biases / LN params
    )

    kernel = functools.partial(encoder_layer_kernel, num_heads=nh, head_dim=hd)
    return pl.pallas_call(
        kernel,
        out_shape=jax.ShapeDtypeStruct((B, S, D), x.dtype),
        grid_spec=pltpu.PrefetchScalarGridSpec(
            num_scalar_prefetch=0,
            grid=(B // bb,),
            in_specs=in_specs,
            out_specs=pl.BlockSpec((bb, S, D), lambda b: (b, 0, 0)),
        ),
        compiler_params=pltpu.CompilerParams(
            dimension_semantics=("parallel",),
            vmem_limit_bytes=64 * 1024 * 1024,                # v5e scoped default is 16 MiB
        ),
        cost_estimate=pl.CostEstimate(
            flops=flops,
            transcendentals=transcendentals,
            bytes_accessed=bytes_accessed,
        ),
    )(
        x,
        wqkv, bqkv, wo, params["bo"],
        params["g1"], params["be1"],
        w1, params["b1"], w2, params["b2"],
        params["g2"], params["be2"],
    )


def init_params(key, model_dim, d_ff):
    ks = jax.random.split(key, 8)
    sd = 1.0 / math.sqrt(model_dim)
    sf = 1.0 / math.sqrt(d_ff)
    return {
        "wq": jax.random.normal(ks[0], (model_dim, model_dim), jnp.float32) * sd,
        "wk": jax.random.normal(ks[1], (model_dim, model_dim), jnp.float32) * sd,
        "wv": jax.random.normal(ks[2], (model_dim, model_dim), jnp.float32) * sd,
        "wo": jax.random.normal(ks[3], (model_dim, model_dim), jnp.float32) * sd,
        "bq": jnp.zeros((1, model_dim), jnp.float32),
        "bk": jnp.zeros((1, model_dim), jnp.float32),
        "bv": jnp.zeros((1, model_dim), jnp.float32),
        "bo": jnp.zeros((1, model_dim), jnp.float32),
        "g1": jnp.ones((1, model_dim), jnp.float32),
        "be1": jnp.zeros((1, model_dim), jnp.float32),
        "w1": jax.random.normal(ks[4], (model_dim, d_ff), jnp.float32) * sd,
        "b1": jnp.zeros((1, d_ff), jnp.float32),
        "w2": jax.random.normal(ks[5], (d_ff, model_dim), jnp.float32) * sf,
        "b2": jnp.zeros((1, model_dim), jnp.float32),
        "g2": jnp.ones((1, model_dim), jnp.float32),
        "be2": jnp.zeros((1, model_dim), jnp.float32),
    }


def encoder_layer_ref(x, params, *, head_dim, eps=1e-5):
    """Pure-JAX f32 reference (standard encoder-layer semantics)."""
    B, S, D = x.shape
    nh = D // head_dim
    q = x @ params["wq"] + params["bq"]
    k = x @ params["wk"] + params["bk"]
    v = x @ params["wv"] + params["bv"]
    split = lambda t: t.reshape(B, S, nh, head_dim).transpose(0, 2, 1, 3)
    qh, kh, vh = split(q), split(k), split(v)
    s = jnp.einsum("bhqd,bhkd->bhqk", qh, kh) / math.sqrt(head_dim)
    p = jax.nn.softmax(s, axis=-1)
    ctx = jnp.einsum("bhqk,bhkd->bhqd", p, vh).transpose(0, 2, 1, 3).reshape(B, S, D)
    attn = ctx @ params["wo"] + params["bo"]
    y = x + attn
    y = (y - y.mean(-1, keepdims=True)) / jnp.sqrt(y.var(-1, keepdims=True) + eps)
    y = y * params["g1"] + params["be1"]
    h = jnp.maximum(y @ params["w1"] + params["b1"], 0.0)
    ff = h @ params["w2"] + params["b2"]
    z = y + ff
    z = (z - z.mean(-1, keepdims=True)) / jnp.sqrt(z.var(-1, keepdims=True) + eps)
    return z * params["g2"] + params["be2"]


if __name__ == "__main__":
    # small shapes consistent with the module: seq=8, model_dim=32, head_dim=8
    B, S, D = 2, 8, 32
    head_dim = 8
    d_ff = 4 * D

    key = jax.random.PRNGKey(0)
    kx, kp = jax.random.split(key)
    x = jax.random.normal(kx, (B, S, D), jnp.float32)
    params = init_params(kp, D, d_ff)

    out = encoder_layer(x, params, head_dim=head_dim)
    out = jax.block_until_ready(out)

    ref = encoder_layer_ref(x, params, head_dim=head_dim)
    assert out.shape == (B, S, D)
    # bf16 MXU operands + approx reciprocal -> relax vs. pure-f32 reference
    assert jnp.allclose(out, ref, atol=5e-2, rtol=5e-2)

    print("KERNEL_OK")
</pallas_src>

<mosaic_0001>
module attributes {stable_mosaic.version = 11 : i64} {
  func.func @encoder_layer_kernel(%arg0: i32, %arg1: memref<2x8x32xf32, #tpu.memory_space<vmem>>, %arg2: memref<32x96xbf16, #tpu.memory_space<vmem>>, %arg3: memref<1x96xf32, #tpu.memory_space<vmem>>, %arg4: memref<32x32xbf16, #tpu.memory_space<vmem>>, %arg5: memref<1x32xf32, #tpu.memory_space<vmem>>, %arg6: memref<1x32xf32, #tpu.memory_space<vmem>>, %arg7: memref<1x32xf32, #tpu.memory_space<vmem>>, %arg8: memref<32x128xbf16, #tpu.memory_space<vmem>>, %arg9: memref<1x128xf32, #tpu.memory_space<vmem>>, %arg10: memref<128x32xbf16, #tpu.memory_space<vmem>>, %arg11: memref<1x32xf32, #tpu.memory_space<vmem>>, %arg12: memref<1x32xf32, #tpu.memory_space<vmem>>, %arg13: memref<1x32xf32, #tpu.memory_space<vmem>>, %arg14: memref<2x8x32xf32, #tpu.memory_space<vmem>>) attributes {dimension_semantics = [#tpu.dimension_semantics<parallel>], iteration_bounds = array<i64: 1>, scalar_prefetch = 0 : i64, scratch_operands = 0 : i64, tpu.core_type = #tpu.core_type<tc>, window_params = [{transform_indices = @transform_0, window_bounds = array<i64: 2, 8, 32>}, {pipeline_mode = #tpu.pipeline_mode<synchronous>, transform_indices = @transform_1, window_bounds = array<i64: 32, 96>}, {pipeline_mode = #tpu.pipeline_mode<synchronous>, transform_indices = @transform_2, window_bounds = array<i64: 1, 96>}, {pipeline_mode = #tpu.pipeline_mode<synchronous>, transform_indices = @transform_3, window_bounds = array<i64: 32, 32>}, {pipeline_mode = #tpu.pipeline_mode<synchronous>, transform_indices = @transform_4, window_bounds = array<i64: 1, 32>}, {pipeline_mode = #tpu.pipeline_mode<synchronous>, transform_indices = @transform_5, window_bounds = array<i64: 1, 32>}, {pipeline_mode = #tpu.pipeline_mode<synchronous>, transform_indices = @transform_6, window_bounds = array<i64: 1, 32>}, {pipeline_mode = #tpu.pipeline_mode<synchronous>, transform_indices = @transform_7, window_bounds = array<i64: 32, 128>}, {pipeline_mode = #tpu.pipeline_mode<synchronous>, transform_indices = @transform_8, window_bounds = array<i64: 1, 128>}, {pipeline_mode = #tpu.pipeline_mode<synchronous>, transform_indices = @transform_9, window_bounds = array<i64: 128, 32>}, {pipeline_mode = #tpu.pipeline_mode<synchronous>, transform_indices = @transform_10, window_bounds = array<i64: 1, 32>}, {pipeline_mode = #tpu.pipeline_mode<synchronous>, transform_indices = @transform_11, window_bounds = array<i64: 1, 32>}, {pipeline_mode = #tpu.pipeline_mode<synchronous>, transform_indices = @transform_12, window_bounds = array<i64: 1, 32>}, {transform_indices = @transform_13, window_bounds = array<i64: 2, 8, 32>}]} {
    %c0 = arith.constant 0 : index
    %c0_0 = arith.constant 0 : index
    %c0_1 = arith.constant 0 : index
    %0 = vector.load %arg1[%c0, %c0_0, %c0_1] : memref<2x8x32xf32, #tpu.memory_space<vmem>>, vector<2x8x32xf32>
    %1 = vector.shape_cast %0 : vector<2x8x32xf32> to vector<16x32xf32>
    %2 = arith.truncf %1 : vector<16x32xf32> to vector<16x32xbf16>
    %c0_2 = arith.constant 0 : index
    %c0_3 = arith.constant 0 : index
    %3 = vector.load %arg2[%c0_2, %c0_3] : memref<32x96xbf16, #tpu.memory_space<vmem>>, vector<32x96xbf16>
    %cst = arith.constant dense<0.000000e+00> : vector<16x96xf32>
    %4 = tpu.matmul %2, %3, %cst {dimension_numbers = #tpu.dot_dimension_numbers<[1], [0], [0], [1], [0, 0, 1, 1], [], []>} : vector<16x32xbf16>, vector<32x96xbf16>, vector<16x96xf32> -> vector<16x96xf32>
    %c0_4 = arith.constant 0 : index
    %c0_5 = arith.constant 0 : index
    %5 = vector.load %arg3[%c0_4, %c0_5] : memref<1x96xf32, #tpu.memory_space<vmem>>, vector<1x96xf32>
    %6 = vector.broadcast %5 : vector<1x96xf32> to vector<16x96xf32>
    %7 = arith.addf %4, %6 : vector<16x96xf32>
    %8 = vector.extract_strided_slice %7 {offsets = [0, 0], sizes = [16, 32], strides = [1, 1]} : vector<16x96xf32> to vector<16x32xf32>
    %9 = vector.shape_cast %8 : vector<16x32xf32> to vector<2x8x32xf32>
    %10 = arith.truncf %9 : vector<2x8x32xf32> to vector<2x8x32xbf16>
    %11 = vector.extract_strided_slice %7 {offsets = [0, 32], sizes = [16, 32], strides = [1, 1]} : vector<16x96xf32> to vector<16x32xf32>
    %12 = vector.shape_cast %11 : vector<16x32xf32> to vector<2x8x32xf32>
    %13 = arith.truncf %12 : vector<2x8x32xf32> to vector<2x8x32xbf16>
    %14 = vector.extract_strided_slice %7 {offsets = [0, 64], sizes = [16, 32], strides = [1, 1]} : vector<16x96xf32> to vector<16x32xf32>
    %15 = vector.shape_cast %14 : vector<16x32xf32> to vector<2x8x32xf32>
    %16 = arith.truncf %15 : vector<2x8x32xf32> to vector<2x8x32xbf16>
    %17 = vector.extract_strided_slice %10 {offsets = [0, 0, 0], sizes = [2, 8, 8], strides = [1, 1, 1]} : vector<2x8x32xbf16> to vector<2x8x8xbf16>
    %18 = vector.extract_strided_slice %13 {offsets = [0, 0, 0], sizes = [2, 8, 8], strides = [1, 1, 1]} : vector<2x8x32xbf16> to vector<2x8x8xbf16>
    "tpu.trace_start"() <{level = 10 : i32, message = "bqd,bkd->bqk"}> : () -> ()
    %cst_6 = arith.constant dense<0.000000e+00> : vector<2x8x8xf32>
    %19 = tpu.matmul %17, %18, %cst_6 {dimension_numbers = #tpu.dot_dimension_numbers<[2], [2], [1], [1], [0, 0, 0, 1, 1, 1], [0], [0]>} : vector<2x8x8xbf16>, vector<2x8x8xbf16>, vector<2x8x8xf32> -> vector<2x8x8xf32>
    "tpu.trace_stop"() : () -> ()
    %cst_7 = arith.constant dense<0xFF800000> : vector<2x8xf32>
    %20 = vector.multi_reduction <maximumf>, %19, %cst_7 [2] : vector<2x8x8xf32> to vector<2x8xf32>
    %21 = vector.shape_cast %20 : vector<2x8xf32> to vector<2x8x1xf32>
    %22 = vector.broadcast %21 : vector<2x8x1xf32> to vector<2x8x8xf32>
    %23 = arith.subf %19, %22 : vector<2x8x8xf32>
    %24 = math.exp %23 : vector<2x8x8xf32>
    %cst_8 = arith.constant dense<0.000000e+00> : vector<2x8xf32>
    %25 = vector.multi_reduction <add>, %24, %cst_8 [2] : vector<2x8x8xf32> to vector<2x8xf32>
    %26 = vector.shape_cast %25 : vector<2x8xf32> to vector<2x8x1xf32>
    %27 = tpu.reciprocal %26 {approx = true} : vector<2x8x1xf32> -> vector<2x8x1xf32>
    %28 = vector.broadcast %27 : vector<2x8x1xf32> to vector<2x8x8xf32>
    %29 = arith.mulf %24, %28 : vector<2x8x8xf32>
    %30 = arith.truncf %29 : vector<2x8x8xf32> to vector<2x8x8xbf16>
    %31 = vector.extract_strided_slice %16 {offsets = [0, 0, 0], sizes = [2, 8, 8], strides = [1, 1, 1]} : vector<2x8x32xbf16> to vector<2x8x8xbf16>
    "tpu.trace_start"() <{level = 10 : i32, message = "bqk,bkd->bqd"}> : () -> ()
    %cst_9 = arith.constant dense<0.000000e+00> : vector<2x8x8xf32>
    %32 = tpu.matmul %30, %31, %cst_9 {dimension_numbers = #tpu.dot_dimension_numbers<[2], [1], [1], [2], [0, 0, 0, 1, 1, 2], [0], [0]>} : vector<2x8x8xbf16>, vector<2x8x8xbf16>, vector<2x8x8xf32> -> vector<2x8x8xf32>
    "tpu.trace_stop"() : () -> ()
    %33 = vector.extract_strided_slice %10 {offsets = [0, 0, 8], sizes = [2, 8, 8], strides = [1, 1, 1]} : vector<2x8x32xbf16> to vector<2x8x8xbf16>
    %34 = vector.extract_strided_slice %13 {offsets = [0, 0, 8], sizes = [2, 8, 8], strides = [1, 1, 1]} : vector<2x8x32xbf16> to vector<2x8x8xbf16>
    "tpu.trace_start"() <{level = 10 : i32, message = "bqd,bkd->bqk"}> : () -> ()
    %cst_10 = arith.constant dense<0.000000e+00> : vector<2x8x8xf32>
    %35 = tpu.matmul %33, %34, %cst_10 {dimension_numbers = #tpu.dot_dimension_numbers<[2], [2], [1], [1], [0, 0, 0, 1, 1, 1], [0], [0]>} : vector<2x8x8xbf16>, vector<2x8x8xbf16>, vector<2x8x8xf32> -> vector<2x8x8xf32>
    "tpu.trace_stop"() : () -> ()
    %cst_11 = arith.constant dense<0xFF800000> : vector<2x8xf32>
    %36 = vector.multi_reduction <maximumf>, %35, %cst_11 [2] : vector<2x8x8xf32> to vector<2x8xf32>
    %37 = vector.shape_cast %36 : vector<2x8xf32> to vector<2x8x1xf32>
    %38 = vector.broadcast %37 : vector<2x8x1xf32> to vector<2x8x8xf32>
    %39 = arith.subf %35, %38 : vector<2x8x8xf32>
    %40 = math.exp %39 : vector<2x8x8xf32>
    %cst_12 = arith.constant dense<0.000000e+00> : vector<2x8xf32>
    %41 = vector.multi_reduction <add>, %40, %cst_12 [2] : vector<2x8x8xf32> to vector<2x8xf32>
    %42 = vector.shape_cast %41 : vector<2x8xf32> to vector<2x8x1xf32>
    %43 = tpu.reciprocal %42 {approx = true} : vector<2x8x1xf32> -> vector<2x8x1xf32>
    %44 = vector.broadcast %43 : vector<2x8x1xf32> to vector<2x8x8xf32>
    %45 = arith.mulf %40, %44 : vector<2x8x8xf32>
    %46 = arith.truncf %45 : vector<2x8x8xf32> to vector<2x8x8xbf16>
    %47 = vector.extract_strided_slice %16 {offsets = [0, 0, 8], sizes = [2, 8, 8], strides = [1, 1, 1]} : vector<2x8x32xbf16> to vector<2x8x8xbf16>
    "tpu.trace_start"() <{level = 10 : i32, message = "bqk,bkd->bqd"}> : () -> ()
    %cst_13 = arith.constant dense<0.000000e+00> : vector<2x8x8xf32>
    %48 = tpu.matmul %46, %47, %cst_13 {dimension_numbers = #tpu.dot_dimension_numbers<[2], [1], [1], [2], [0, 0, 0, 1, 1, 2], [0], [0]>} : vector<2x8x8xbf16>, vector<2x8x8xbf16>, vector<2x8x8xf32> -> vector<2x8x8xf32>
    "tpu.trace_stop"() : () -> ()
    %49 = vector.extract_strided_slice %10 {offsets = [0, 0, 16], sizes = [2, 8, 8], strides = [1, 1, 1]} : vector<2x8x32xbf16> to vector<2x8x8xbf16>
    %50 = vector.extract_strided_slice %13 {offsets = [0, 0, 16], sizes = [2, 8, 8], strides = [1, 1, 1]} : vector<2x8x32xbf16> to vector<2x8x8xbf16>
    "tpu.trace_start"() <{level = 10 : i32, message = "bqd,bkd->bqk"}> : () -> ()
    %cst_14 = arith.constant dense<0.000000e+00> : vector<2x8x8xf32>
    %51 = tpu.matmul %49, %50, %cst_14 {dimension_numbers = #tpu.dot_dimension_numbers<[2], [2], [1], [1], [0, 0, 0, 1, 1, 1], [0], [0]>} : vector<2x8x8xbf16>, vector<2x8x8xbf16>, vector<2x8x8xf32> -> vector<2x8x8xf32>
    "tpu.trace_stop"() : () -> ()
    %cst_15 = arith.constant dense<0xFF800000> : vector<2x8xf32>
    %52 = vector.multi_reduction <maximumf>, %51, %cst_15 [2] : vector<2x8x8xf32> to vector<2x8xf32>
    %53 = vector.shape_cast %52 : vector<2x8xf32> to vector<2x8x1xf32>
    %54 = vector.broadcast %53 : vector<2x8x1xf32> to vector<2x8x8xf32>
    %55 = arith.subf %51, %54 : vector<2x8x8xf32>
    %56 = math.exp %55 : vector<2x8x8xf32>
    %cst_16 = arith.constant dense<0.000000e+00> : vector<2x8xf32>
    %57 = vector.multi_reduction <add>, %56, %cst_16 [2] : vector<2x8x8xf32> to vector<2x8xf32>
    %58 = vector.shape_cast %57 : vector<2x8xf32> to vector<2x8x1xf32>
    %59 = tpu.reciprocal %58 {approx = true} : vector<2x8x1xf32> -> vector<2x8x1xf32>
    %60 = vector.broadcast %59 : vector<2x8x1xf32> to vector<2x8x8xf32>
    %61 = arith.mulf %56, %60 : vector<2x8x8xf32>
    %62 = arith.truncf %61 : vector<2x8x8xf32> to vector<2x8x8xbf16>
    %63 = vector.extract_strided_slice %16 {offsets = [0, 0, 16], sizes = [2, 8, 8], strides = [1, 1, 1]} : vector<2x8x32xbf16> to vector<2x8x8xbf16>
    "tpu.trace_start"() <{level = 10 : i32, message = "bqk,bkd->bqd"}> : () -> ()
    %cst_17 = arith.constant dense<0.000000e+00> : vector<2x8x8xf32>
    %64 = tpu.matmul %62, %63, %cst_17 {dimension_numbers = #tpu.dot_dimension_numbers<[2], [1], [1], [2], [0, 0, 0, 1, 1, 2], [0], [0]>} : vector<2x8x8xbf16>, vector<2x8x8xbf16>, vector<2x8x8xf32> -> vector<2x8x8xf32>
    "tpu.trace_stop"() : () -> ()
    %65 = vector.extract_strided_slice %10 {offsets = [0, 0, 24], sizes = [2, 8, 8], strides = [1, 1, 1]} : vector<2x8x32xbf16> to vector<2x8x8xbf16>
    %66 = vector.extract_strided_slice %13 {offsets = [0, 0, 24], sizes = [2, 8, 8], strides = [1, 1, 1]} : vector<2x8x32xbf16> to vector<2x8x8xbf16>
    "tpu.trace_start"() <{level = 10 : i32, message = "bqd,bkd->bqk"}> : () -> ()
    %cst_18 = arith.constant dense<0.000000e+00> : vector<2x8x8xf32>
    %67 = tpu.matmul %65, %66, %cst_18 {dimension_numbers = #tpu.dot_dimension_numbers<[2], [2], [1], [1], [0, 0, 0, 1, 1, 1], [0], [0]>} : vector<2x8x8xbf16>, vector<2x8x8xbf16>, vector<2x8x8xf32> -> vector<2x8x8xf32>
    "tpu.trace_stop"() : () -> ()
    %cst_19 = arith.constant dense<0xFF800000> : vector<2x8xf32>
    %68 = vector.multi_reduction <maximumf>, %67, %cst_19 [2] : vector<2x8x8xf32> to vector<2x8xf32>
    %69 = vector.shape_cast %68 : vector<2x8xf32> to vector<2x8x1xf32>
    %70 = vector.broadcast %69 : vector<2x8x1xf32> to vector<2x8x8xf32>
    %71 = arith.subf %67, %70 : vector<2x8x8xf32>
    %72 = math.exp %71 : vector<2x8x8xf32>
    %cst_20 = arith.constant dense<0.000000e+00> : vector<2x8xf32>
    %73 = vector.multi_reduction <add>, %72, %cst_20 [2] : vector<2x8x8xf32> to vector<2x8xf32>
    %74 = vector.shape_cast %73 : vector<2x8xf32> to vector<2x8x1xf32>
    %75 = tpu.reciprocal %74 {approx = true} : vector<2x8x1xf32> -> vector<2x8x1xf32>
    %76 = vector.broadcast %75 : vector<2x8x1xf32> to vector<2x8x8xf32>
    %77 = arith.mulf %72, %76 : vector<2x8x8xf32>
    %78 = arith.truncf %77 : vector<2x8x8xf32> to vector<2x8x8xbf16>
    %79 = vector.extract_strided_slice %16 {offsets = [0, 0, 24], sizes = [2, 8, 8], strides = [1, 1, 1]} : vector<2x8x32xbf16> to vector<2x8x8xbf16>
    "tpu.trace_start"() <{level = 10 : i32, message = "bqk,bkd->bqd"}> : () -> ()
    %cst_21 = arith.constant dense<0.000000e+00> : vector<2x8x8xf32>
    %80 = tpu.matmul %78, %79, %cst_21 {dimension_numbers = #tpu.dot_dimension_numbers<[2], [1], [1], [2], [0, 0, 0, 1, 1, 2], [0], [0]>} : vector<2x8x8xbf16>, vector<2x8x8xbf16>, vector<2x8x8xf32> -> vector<2x8x8xf32>
    "tpu.trace_stop"() : () -> ()
    %81 = tpu.concatenate %32, %48, %64, %80 in 2 : vector<2x8x8xf32>, vector<2x8x8xf32>, vector<2x8x8xf32>, vector<2x8x8xf32> -> vector<2x8x32xf32>
    %82 = vector.shape_cast %81 : vector<2x8x32xf32> to vector<16x32xf32>
    %83 = arith.truncf %82 : vector<16x32xf32> to vector<16x32xbf16>
    %c0_22 = arith.constant 0 : index
    %c0_23 = arith.constant 0 : index
    %84 = vector.load %arg4[%c0_22, %c0_23] : memref<32x32xbf16, #tpu.memory_space<vmem>>, vector<32x32xbf16>
    %cst_24 = arith.constant dense<0.000000e+00> : vector<16x32xf32>
    %85 = tpu.matmul %83, %84, %cst_24 {dimension_numbers = #tpu.dot_dimension_numbers<[1], [0], [0], [1], [0, 0, 1, 1], [], []>} : vector<16x32xbf16>, vector<32x32xbf16>, vector<16x32xf32> -> vector<16x32xf32>
    %c0_25 = arith.constant 0 : index
    %c0_26 = arith.constant 0 : index
    %86 = vector.load %arg5[%c0_25, %c0_26] : memref<1x32xf32, #tpu.memory_space<vmem>>, vector<1x32xf32>
    %87 = vector.broadcast %86 : vector<1x32xf32> to vector<16x32xf32>
    %88 = arith.addf %85, %87 : vector<16x32xf32>
    %89 = arith.addf %1, %88 : vector<16x32xf32>
    %cst_27 = arith.constant dense<0.000000e+00> : vector<16xf32>
    %90 = vector.multi_reduction <add>, %89, %cst_27 [1] : vector<16x32xf32> to vector<16xf32>
    %91 = vector.shape_cast %90 : vector<16xf32> to vector<16x1xf32>
    %cst_28 = arith.constant 3.200000e+01 : f32
    %92 = vector.broadcast %cst_28 : f32 to vector<16x1xf32>
    %93 = arith.divf %91, %92 : vector<16x1xf32>
    %94 = vector.broadcast %93 : vector<16x1xf32> to vector<16x32xf32>
    %95 = arith.subf %89, %94 : vector<16x32xf32>
    %96 = arith.mulf %95, %95 : vector<16x32xf32>
    %cst_29 = arith.constant dense<0.000000e+00> : vector<16xf32>
    %97 = vector.multi_reduction <add>, %96, %cst_29 [1] : vector<16x32xf32> to vector<16xf32>
    %98 = vector.shape_cast %97 : vector<16xf32> to vector<16x1xf32>
    %cst_30 = arith.constant 3.200000e+01 : f32
    %99 = vector.broadcast %cst_30 : f32 to vector<16x1xf32>
    %100 = arith.divf %98, %99 : vector<16x1xf32>
    %cst_31 = arith.constant 9.99999974E-6 : f32
    %101 = vector.broadcast %cst_31 : f32 to vector<16x1xf32>
    %102 = arith.addf %100, %101 : vector<16x1xf32>
    %103 = math.rsqrt %102 : vector<16x1xf32>
    %104 = vector.broadcast %103 : vector<16x1xf32> to vector<16x32xf32>
    %105 = arith.mulf %95, %104 : vector<16x32xf32>
    %c0_32 = arith.constant 0 : index
    %c0_33 = arith.constant 0 : index
    %106 = vector.load %arg6[%c0_32, %c0_33] : memref<1x32xf32, #tpu.memory_space<vmem>>, vector<1x32xf32>
    %107 = vector.broadcast %106 : vector<1x32xf32> to vector<16x32xf32>
    %108 = arith.mulf %105, %107 : vector<16x32xf32>
    %c0_34 = arith.constant 0 : index
    %c0_35 = arith.constant 0 : index
    %109 = vector.load %arg7[%c0_34, %c0_35] : memref<1x32xf32, #tpu.memory_space<vmem>>, vector<1x32xf32>
    %110 = vector.broadcast %109 : vector<1x32xf32> to vector<16x32xf32>
    %111 = arith.addf %108, %110 : vector<16x32xf32>
    %112 = arith.truncf %111 : vector<16x32xf32> to vector<16x32xbf16>
    %c0_36 = arith.constant 0 : index
    %c0_37 = arith.constant 0 : index
    %113 = vector.load %arg8[%c0_36, %c0_37] : memref<32x128xbf16, #tpu.memory_space<vmem>>, vector<32x128xbf16>
    %cst_38 = arith.constant dense<0.000000e+00> : vector<16x128xf32>
    %114 = tpu.matmul %112, %113, %cst_38 {dimension_numbers = #tpu.dot_dimension_numbers<[1], [0], [0], [1], [0, 0, 1, 1], [], []>} : vector<16x32xbf16>, vector<32x128xbf16>, vector<16x128xf32> -> vector<16x128xf32>
    %c0_39 = arith.constant 0 : index
    %c0_40 = arith.constant 0 : index
    %115 = vector.load %arg9[%c0_39, %c0_40] : memref<1x128xf32, #tpu.memory_space<vmem>>, vector<1x128xf32>
    %116 = vector.broadcast %115 : vector<1x128xf32> to vector<16x128xf32>
    %117 = arith.addf %114, %116 : vector<16x128xf32>
    %cst_41 = arith.constant 0.000000e+00 : f32
    %118 = vector.broadcast %cst_41 : f32 to vector<16x128xf32>
    %119 = arith.maximumf %117, %118 : vector<16x128xf32>
    %120 = arith.truncf %119 : vector<16x128xf32> to vector<16x128xbf16>
    %c0_42 = arith.constant 0 : index
    %c0_43 = arith.constant 0 : index
    %121 = vector.load %arg10[%c0_42, %c0_43] : memref<128x32xbf16, #tpu.memory_space<vmem>>, vector<128x32xbf16>
    %cst_44 = arith.constant dense<0.000000e+00> : vector<16x32xf32>
    %122 = tpu.matmul %120, %121, %cst_44 {dimension_numbers = #tpu.dot_dimension_numbers<[1], [0], [0], [1], [0, 0, 1, 1], [], []>} : vector<16x128xbf16>, vector<128x32xbf16>, vector<16x32xf32> -> vector<16x32xf32>
    %c0_45 = arith.constant 0 : index
    %c0_46 = arith.constant 0 : index
    %123 = vector.load %arg11[%c0_45, %c0_46] : memref<1x32xf32, #tpu.memory_space<vmem>>, vector<1x32xf32>
    %124 = vector.broadcast %123 : vector<1x32xf32> to vector<16x32xf32>
    %125 = arith.addf %122, %124 : vector<16x32xf32>
    %126 = arith.addf %111, %125 : vector<16x32xf32>
    %cst_47 = arith.constant dense<0.000000e+00> : vector<16xf32>
    %127 = vector.multi_reduction <add>, %126, %cst_47 [1] : vector<16x32xf32> to vector<16xf32>
    %128 = vector.shape_cast %127 : vector<16xf32> to vector<16x1xf32>
    %cst_48 = arith.constant 3.200000e+01 : f32
    %129 = vector.broadcast %cst_48 : f32 to vector<16x1xf32>
    %130 = arith.divf %128, %129 : vector<16x1xf32>
    %131 = vector.broadcast %130 : vector<16x1xf32> to vector<16x32xf32>
    %132 = arith.subf %126, %131 : vector<16x32xf32>
    %133 = arith.mulf %132, %132 : vector<16x32xf32>
    %cst_49 = arith.constant dense<0.000000e+00> : vector<16xf32>
    %134 = vector.multi_reduction <add>, %133, %cst_49 [1] : vector<16x32xf32> to vector<16xf32>
    %135 = vector.shape_cast %134 : vector<16xf32> to vector<16x1xf32>
    %cst_50 = arith.constant 3.200000e+01 : f32
    %136 = vector.broadcast %cst_50 : f32 to vector<16x1xf32>
    %137 = arith.divf %135, %136 : vector<16x1xf32>
    %cst_51 = arith.constant 9.99999974E-6 : f32
    %138 = vector.broadcast %cst_51 : f32 to vector<16x1xf32>
    %139 = arith.addf %137, %138 : vector<16x1xf32>
    %140 = math.rsqrt %139 : vector<16x1xf32>
    %141 = vector.broadcast %140 : vector<16x1xf32> to vector<16x32xf32>
    %142 = arith.mulf %132, %141 : vector<16x32xf32>
    %c0_52 = arith.constant 0 : index
    %c0_53 = arith.constant 0 : index
    %143 = vector.load %arg12[%c0_52, %c0_53] : memref<1x32xf32, #tpu.memory_space<vmem>>, vector<1x32xf32>
    %144 = vector.broadcast %143 : vector<1x32xf32> to vector<16x32xf32>
    %145 = arith.mulf %142, %144 : vector<16x32xf32>
    %c0_54 = arith.constant 0 : index
    %c0_55 = arith.constant 0 : index
    %146 = vector.load %arg13[%c0_54, %c0_55] : memref<1x32xf32, #tpu.memory_space<vmem>>, vector<1x32xf32>
    %147 = vector.broadcast %146 : vector<1x32xf32> to vector<16x32xf32>
    %148 = arith.addf %145, %147 : vector<16x32xf32>
    %149 = vector.shape_cast %148 : vector<16x32xf32> to vector<2x8x32xf32>
    %c0_56 = arith.constant 0 : index
    %c0_57 = arith.constant 0 : index
    %c0_58 = arith.constant 0 : index
    %150 = vector.load %arg14[%c0_56, %c0_57, %c0_58] : memref<2x8x32xf32, #tpu.memory_space<vmem>>, vector<2x8x32xf32>
    tpu.vector_store %arg14[%c0_56, %c0_57, %c0_58], %149 {strides = array<i32>} : memref<2x8x32xf32, #tpu.memory_space<vmem>>, vector<2x8x32xf32>,
    return
  }
  func.func @transform_0(%arg0: i32) -> (i32, i32, i32) {
    %c0_i32 = arith.constant 0 : i32
    %c0_i32_0 = arith.constant 0 : i32
    %c0_i32_1 = arith.constant 0 : i32
    return %arg0, %c0_i32, %c0_i32_0 : i32, i32, i32
  }
  func.func @transform_1(%arg0: i32) -> (i32, i32) {
    %c0_i32 = arith.constant 0 : i32
    %c0_i32_0 = arith.constant 0 : i32
    %c0_i32_1 = arith.constant 0 : i32
    return %c0_i32, %c0_i32_0 : i32, i32
  }
  func.func @transform_2(%arg0: i32) -> (i32, i32) {
    %c0_i32 = arith.constant 0 : i32
    %c0_i32_0 = arith.constant 0 : i32
    %c0_i32_1 = arith.constant 0 : i32
    return %c0_i32, %c0_i32_0 : i32, i32
  }
  func.func @transform_3(%arg0: i32) -> (i32, i32) {
    %c0_i32 = arith.constant 0 : i32
    %c0_i32_0 = arith.constant 0 : i32
    %c0_i32_1 = arith.constant 0 : i32
    return %c0_i32, %c0_i32_0 : i32, i32
  }
  func.func @transform_4(%arg0: i32) -> (i32, i32) {
    %c0_i32 = arith.constant 0 : i32
    %c0_i32_0 = arith.constant 0 : i32
    %c0_i32_1 = arith.constant 0 : i32
    return %c0_i32, %c0_i32_0 : i32, i32
  }
  func.func @transform_5(%arg0: i32) -> (i32, i32) {
    %c0_i32 = arith.constant 0 : i32
    %c0_i32_0 = arith.constant 0 : i32
    %c0_i32_1 = arith.constant 0 : i32
    return %c0_i32, %c0_i32_0 : i32, i32
  }
  func.func @transform_6(%arg0: i32) -> (i32, i32) {
    %c0_i32 = arith.constant 0 : i32
    %c0_i32_0 = arith.constant 0 : i32
    %c0_i32_1 = arith.constant 0 : i32
    return %c0_i32, %c0_i32_0 : i32, i32
  }
  func.func @transform_7(%arg0: i32) -> (i32, i32) {
    %c0_i32 = arith.constant 0 : i32
    %c0_i32_0 = arith.constant 0 : i32
    %c0_i32_1 = arith.constant 0 : i32
    return %c0_i32, %c0_i32_0 : i32, i32
  }
  func.func @transform_8(%arg0: i32) -> (i32, i32) {
    %c0_i32 = arith.constant 0 : i32
    %c0_i32_0 = arith.constant 0 : i32
    %c0_i32_1 = arith.constant 0 : i32
    return %c0_i32, %c0_i32_0 : i32, i32
  }
  func.func @transform_9(%arg0: i32) -> (i32, i32) {
    %c0_i32 = arith.constant 0 : i32
    %c0_i32_0 = arith.constant 0 : i32
    %c0_i32_1 = arith.constant 0 : i32
    return %c0_i32, %c0_i32_0 : i32, i32
  }
  func.func @transform_10(%arg0: i32) -> (i32, i32) {
    %c0_i32 = arith.constant 0 : i32
    %c0_i32_0 = arith.constant 0 : i32
    %c0_i32_1 = arith.constant 0 : i32
    return %c0_i32, %c0_i32_0 : i32, i32
  }
  func.func @transform_11(%arg0: i32) -> (i32, i32) {
    %c0_i32 = arith.constant 0 : i32
    %c0_i32_0 = arith.constant 0 : i32
    %c0_i32_1 = arith.constant 0 : i32
    return %c0_i32, %c0_i32_0 : i32, i32
  }
  func.func @transform_12(%arg0: i32) -> (i32, i32) {
    %c0_i32 = arith.constant 0 : i32
    %c0_i32_0 = arith.constant 0 : i32
    %c0_i32_1 = arith.constant 0 : i32
    return %c0_i32, %c0_i32_0 : i32, i32
  }
  func.func @transform_13(%arg0: i32) -> (i32, i32, i32) {
    %c0_i32 = arith.constant 0 : i32
    %c0_i32_0 = arith.constant 0 : i32
    %c0_i32_1 = arith.constant 0 : i32
    return %arg0, %c0_i32, %c0_i32_0 : i32, i32, i32
  }
}

</mosaic_0001>

<llo_original>
// kernel: tpu_custom_call.1
$region0: #{tpu_custom_call.1}
  #allocation0 [shape = 'u32[]', space=smem, size = 0x4, offset = 0x4, fixed_abs, tag = 'smem constant byte address 0x4 - core index']
  #allocation1 [shape = 'u32[144,128]{1,0:T(1,128)}', space=vmem, size = 0x12000, scoped, tag = 'internal scratch']
  %s0 = inlined_call_operand.hbm [shape: f32[2,8,32], index: 0, kind: input, shape index: {}]
  %s1 = inlined_call_operand.hbm [shape: bf16[32,96], index: 1, kind: input, shape index: {}]
  %s2 = inlined_call_operand.hbm [shape: f32[1,96], index: 2, kind: input, shape index: {}]
  %s3 = inlined_call_operand.hbm [shape: bf16[32,32], index: 3, kind: input, shape index: {}]
  %s4 = inlined_call_operand.hbm [shape: f32[1,32], index: 4, kind: input, shape index: {}]
  %s5 = inlined_call_operand.hbm [shape: f32[1,32], index: 5, kind: input, shape index: {}]
  %s6 = inlined_call_operand.hbm [shape: f32[1,32], index: 6, kind: input, shape index: {}]
  %s7 = inlined_call_operand.hbm [shape: bf16[32,128], index: 7, kind: input, shape index: {}]
  %s8 = inlined_call_operand.hbm [shape: f32[1,128], index: 8, kind: input, shape index: {}]
  %s9 = inlined_call_operand.hbm [shape: bf16[128,32], index: 9, kind: input, shape index: {}]
  %s10 = inlined_call_operand.hbm [shape: f32[1,32], index: 10, kind: input, shape index: {}]
  %s11 = inlined_call_operand.hbm [shape: f32[1,32], index: 11, kind: input, shape index: {}]
  %s12 = inlined_call_operand.hbm [shape: f32[1,32], index: 12, kind: input, shape index: {}]
  %s13 = inlined_call_operand.hbm [shape: f32[2,8,32], index: 13, kind: output, shape index: {}]
  %s14 = sld [smem:[#allocation0]]
  $region114: #{tpu_custom_call.1} parent=0
    _
  %s16 = ssub.s32 1, %s14
  %s17 = scalar_select 0, %s16, %s14
  $region1: #{tpu_custom_call.1} parent=0
    #allocation2 [shape = 'u8[8192]{0}', space=vmem, size = 0x2000, scoped, tag = 'input window, operand 0, single buffered']
    #allocation3 [shape = 's32[1]{0}', space=sflag, size = 0x4, scoped, tag = 'scoped memory for tpu_custom_call.1']
    #allocation4 [shape = 's32[1]{0}', space=sflag, size = 0x4, scoped, tag = 'scoped memory for tpu_custom_call.1']
    #allocation5 [shape = 'u8[8192]{0}', space=vmem, size = 0x2000, scoped, tag = 'input window, operand 1, single buffered']
    #allocation6 [shape = 's32[1]{0}', space=sflag, size = 0x4, scoped, tag = 'scoped memory for tpu_custom_call.1']
    #allocation7 [shape = 'u8[512]{0}', space=vmem, size = 0x400, scoped, tag = 'input window, operand 2, single buffered']
    #allocation8 [shape = 'u8[8192]{0}', space=vmem, size = 0x2000, scoped, tag = 'input window, operand 3, single buffered']
    #allocation9 [shape = 's32[1]{0}', space=sflag, size = 0x4, scoped, tag = 'scoped memory for tpu_custom_call.1']
    #allocation10 [shape = 'u8[512]{0}', space=vmem, size = 0x400, scoped, tag = 'input window, operand 4, single buffered']
    #allocation11 [shape = 'u8[512]{0}', space=vmem, size = 0x400, scoped, tag = 'input window, operand 5, single buffered']
    #allocation12 [shape = 's32[1]{0}', space=sflag, size = 0x4, scoped, tag = 'scoped memory for tpu_custom_call.1']
    #allocation13 [shape = 'u8[512]{0}', space=vmem, size = 0x400, scoped, tag = 'input window, operand 6, single buffered']
    #allocation14 [shape = 'u8[8192]{0}', space=vmem, size = 0x2000, scoped, tag = 'input window, operand 7, single buffered']
    #allocation15 [shape = 's32[1]{0}', space=sflag, size = 0x4, scoped, tag = 'scoped memory for tpu_custom_call.1']
    #allocation16 [shape = 'u8[512]{0}', space=vmem, size = 0x400, scoped, tag = 'input window, operand 8, single buffered']
    #allocation17 [shape = 'u8[32768]{0}', space=vmem, size = 0x8000, scoped, tag = 'input window, operand 9, single buffered']
    #allocation18 [shape = 's32[1]{0}', space=sflag, size = 0x4, scoped, tag = 'scoped memory for tpu_custom_call.1']
    #allocation19 [shape = 'u8[512]{0}', space=vmem, size = 0x400, scoped, tag = 'input window, operand 10, single buffered']
    #allocation20 [shape = 'u8[512]{0}', space=vmem, size = 0x400, scoped, tag = 'input window, operand 11, single buffered']
    #allocation21 [shape = 's32[1]{0}', space=sflag, size = 0x4, scoped, tag = 'scoped memory for tpu_custom_call.1']
    #allocation22 [shape = 'u8[512]{0}', space=vmem, size = 0x400, scoped, tag = 'input window, operand 12, single buffered']
    #allocation23 [shape = 'u8[8192]{0}', space=vmem, size = 0x2000, scoped, tag = 'output window, operand 0, single buffered']
    %18 = vsyncpa [#allocation3], 0
    %19 = vsyncpa [#allocation6], 0
    %20 = vsyncpa [#allocation9], 0
    %21 = vsyncpa [#allocation12], 0
    %22 = vsyncpa [#allocation15], 0
    %23 = vsyncpa [#allocation18], 0
    %24 = vsyncpa [#allocation21], 0
    %25 = vsyncpa [#allocation4], 0
    // Predicated region
    $region2: #{tpu_custom_call.1} parent=1 // pred_check
      _
    $region3: #{tpu_custom_call.1} parent=1 // pred_check_branch
      %27 = sbr.rel (0) target = $region5
    $region4: #{tpu_custom_call.1} parent=1 // pred_region
      %s29 = ssub.s32 256, 256
      %30 = vsyncadd [#allocation3], %s29
      %s31 = sshll.u32 [#allocation2], 4
      %s32 = int_to_ptr.vmem [resolvable:$true] %s31
      %37 = dma.hbm_to_vmem [thread:$0]  %s0, 256, %s32, [#allocation3], 128, 128, 8
    $region5: #{tpu_custom_call.1} parent=1 // pred_fallthru
      _
    // Predicated region
    $region6: #{tpu_custom_call.1} parent=1 // pred_check
      _
    $region7: #{tpu_custom_call.1} parent=1 // pred_check_branch
      %39 = sbr.rel (0) target = $region9
    $region8: #{tpu_custom_call.1} parent=1 // pred_region
      %s41 = ssub.s32 256, 256
      %42 = vsyncadd [#allocation6], %s41
      %s43 = sshll.u32 [#allocation5], 4
      %s44 = int_to_ptr.vmem [resolvable:$true] %s43
      %49 = dma.hbm_to_vmem [thread:$0]  %s1, 256, %s44, [#allocation6], 64, 64, 4
    $region9: #{tpu_custom_call.1} parent=1 // pred_fallthru
      _
    // Predicated region
    $region10: #{tpu_custom_call.1} parent=1 // pred_check
      _
    $region11: #{tpu_custom_call.1} parent=1 // pred_check_branch
      %51 = sbr.rel (0) target = $region13
    $region12: #{tpu_custom_call.1} parent=1 // pred_region
      %s53 = ssub.s32 16, 16
      %54 = vsyncadd [#allocation6], %s53
      %s56 = sshll.u32 [#allocation7], 4
      %s57 = int_to_ptr.vmem [resolvable:$true] %s56
      %59 = dma.hbm_to_vmem [thread:$0]  %s2, 16, %s57, [#allocation6]
    $region13: #{tpu_custom_call.1} parent=1 // pred_fallthru
      _
    // Predicated region
    $region14: #{tpu_custom_call.1} parent=1 // pred_check
      _
    $region15: #{tpu_custom_call.1} parent=1 // pred_check_branch
      %61 = sbr.rel (0) target = $region17
    $region16: #{tpu_custom_call.1} parent=1 // pred_region
      %s63 = ssub.s32 256, 256
      %64 = vsyncadd [#allocation9], %s63
      %s65 = sshll.u32 [#allocation8], 4
      %s66 = int_to_ptr.vmem [resolvable:$true] %s65
      %71 = dma.hbm_to_vmem [thread:$0]  %s3, 256, %s66, [#allocation9], 64, 64, 4
    $region17: #{tpu_custom_call.1} parent=1 // pred_fallthru
      _
    // Predicated region
    $region18: #{tpu_custom_call.1} parent=1 // pred_check
      _
    $region19: #{tpu_custom_call.1} parent=1 // pred_check_branch
      %73 = sbr.rel (0) target = $region21
    $region20: #{tpu_custom_call.1} parent=1 // pred_region
      %s75 = ssub.s32 16, 16
      %76 = vsyncadd [#allocation9], %s75
      %s78 = sshll.u32 [#allocation10], 4
      %s79 = int_to_ptr.vmem [resolvable:$true] %s78
      %81 = dma.hbm_to_vmem [thread:$0]  %s4, 16, %s79, [#allocation9]
    $region21: #{tpu_custom_call.1} parent=1 // pred_fallthru
      _
    // Predicated region
    $region22: #{tpu_custom_call.1} parent=1 // pred_check
      _
    $region23: #{tpu_custom_call.1} parent=1 // pred_check_branch
      %83 = sbr.rel (0) target = $region25
    $region24: #{tpu_custom_call.1} parent=1 // pred_region
      %s85 = ssub.s32 16, 16
      %86 = vsyncadd [#allocation12], %s85
      %s88 = sshll.u32 [#allocation11], 4
      %s89 = int_to_ptr.vmem [resolvable:$true] %s88
      %91 = dma.hbm_to_vmem [thread:$0]  %s5, 16, %s89, [#allocation12]
    $region25: #{tpu_custom_call.1} parent=1 // pred_fallthru
      _
    // Predicated region
    $region26: #{tpu_custom_call.1} parent=1 // pred_check
      _
    $region27: #{tpu_custom_call.1} parent=1 // pred_check_branch
      %93 = sbr.rel (0) target = $region29
    $region28: #{tpu_custom_call.1} parent=1 // pred_region
      %s95 = ssub.s32 16, 16
      %96 = vsyncadd [#allocation12], %s95
      %s98 = sshll.u32 [#allocation13], 4
      %s99 = int_to_ptr.vmem [resolvable:$true] %s98
      %101 = dma.hbm_to_vmem [thread:$0]  %s6, 16, %s99, [#allocation12]
    $region29: #{tpu_custom_call.1} parent=1 // pred_fallthru
      _
    // Predicated region
    $region30: #{tpu_custom_call.1} parent=1 // pred_check
      _
    $region31: #{tpu_custom_call.1} parent=1 // pred_check_branch
      %103 = sbr.rel (0) target = $region33
    $region32: #{tpu_custom_call.1} parent=1 // pred_region
      %s105 = ssub.s32 256, 256
      %106 = vsyncadd [#allocation15], %s105
      %s107 = sshll.u32 [#allocation14], 4
      %s108 = int_to_ptr.vmem [resolvable:$true] %s107
      %113 = dma.hbm_to_vmem [thread:$0]  %s7, 256, %s108, [#allocation15], 64, 64, 4
    $region33: #{tpu_custom_call.1} parent=1 // pred_fallthru
      _
    // Predicated region
    $region34: #{tpu_custom_call.1} parent=1 // pred_check
      _
    $region35: #{tpu_custom_call.1} parent=1 // pred_check_branch
      %115 = sbr.rel (0) target = $region37
    $region36: #{tpu_custom_call.1} parent=1 // pred_region
      %s117 = ssub.s32 16, 16
      %118 = vsyncadd [#allocation15], %s117
      %s120 = sshll.u32 [#allocation16], 4
      %s121 = int_to_ptr.vmem [resolvable:$true] %s120
      %123 = dma.hbm_to_vmem [thread:$0]  %s8, 16, %s121, [#allocation15]
    $region37: #{tpu_custom_call.1} parent=1 // pred_fallthru
      _
    // Predicated region
    $region38: #{tpu_custom_call.1} parent=1 // pred_check
      _
    $region39: #{tpu_custom_call.1} parent=1 // pred_check_branch
      %125 = sbr.rel (0) target = $region41
    $region40: #{tpu_custom_call.1} parent=1 // pred_region
      %s127 = ssub.s32 1024, 1024
      %128 = vsyncadd [#allocation18], %s127
      %s129 = sshll.u32 [#allocation17], 4
      %s130 = int_to_ptr.vmem [resolvable:$true] %s129
      %135 = dma.hbm_to_vmem [thread:$0]  %s9, 1024, %s130, [#allocation18], 64, 64, 4
    $region41: #{tpu_custom_call.1} parent=1 // pred_fallthru
      _
    // Predicated region
    $region42: #{tpu_custom_call.1} parent=1 // pred_check
      _
    $region43: #{tpu_custom_call.1} parent=1 // pred_check_branch
      %137 = sbr.rel (0) target = $region45
    $region44: #{tpu_custom_call.1} parent=1 // pred_region
      %s139 = ssub.s32 16, 16
      %140 = vsyncadd [#allocation18], %s139
      %s142 = sshll.u32 [#allocation19], 4
      %s143 = int_to_ptr.vmem [resolvable:$true] %s142
      %145 = dma.hbm_to_vmem [thread:$0]  %s10, 16, %s143, [#allocation18]
    $region45: #{tpu_custom_call.1} parent=1 // pred_fallthru
      _
    // Predicated region
    $region46: #{tpu_custom_call.1} parent=1 // pred_check
      _
    $region47: #{tpu_custom_call.1} parent=1 // pred_check_branch
      %147 = sbr.rel (0) target = $region49
    $region48: #{tpu_custom_call.1} parent=1 // pred_region
      %s149 = ssub.s32 16, 16
      %150 = vsyncadd [#allocation21], %s149
      %s152 = sshll.u32 [#allocation20], 4
      %s153 = int_to_ptr.vmem [resolvable:$true] %s152
      %155 = dma.hbm_to_vmem [thread:$0]  %s11, 16, %s153, [#allocation21]
    $region49: #{tpu_custom_call.1} parent=1 // pred_fallthru
      _
    // Predicated region
    $region50: #{tpu_custom_call.1} parent=1 // pred_check
      _
    $region51: #{tpu_custom_call.1} parent=1 // pred_check_branch
      %157 = sbr.rel (0) target = $region53
    $region52: #{tpu_custom_call.1} parent=1 // pred_region
      %s159 = ssub.s32 16, 16
      %160 = vsyncadd [#allocation21], %s159
      %s162 = sshll.u32 [#allocation22], 4
      %s163 = int_to_ptr.vmem [resolvable:$true] %s162
      %165 = dma.hbm_to_vmem [thread:$0]  %s12, 16, %s163, [#allocation21]
    $region53: #{tpu_custom_call.1} parent=1 // pred_fallthru
      _
    // Predicated region
    $region54: #{tpu_custom_call.1} parent=1 // pred_check
      _
    $region55: #{tpu_custom_call.1} parent=1 // pred_check_branch
      %167 = sbr.rel (0) target = $region57
    $region56: #{tpu_custom_call.1} parent=1 // pred_region
      %168 = dma.done [#allocation3], 256
    $region57: #{tpu_custom_call.1} parent=1 // pred_fallthru
      _
    // Predicated region
    $region58: #{tpu_custom_call.1} parent=1 // pred_check
      _
    $region59: #{tpu_custom_call.1} parent=1 // pred_check_branch
      %170 = sbr.rel (0) target = $region61
    $region60: #{tpu_custom_call.1} parent=1 // pred_region
      %171 = dma.done [#allocation6], 256
    $region61: #{tpu_custom_call.1} parent=1 // pred_fallthru
      _
    // Predicated region
    $region62: #{tpu_custom_call.1} parent=1 // pred_check
      _
    $region63: #{tpu_custom_call.1} parent=1 // pred_check_branch
      %173 = sbr.rel (0) target = $region65
    $region64: #{tpu_custom_call.1} parent=1 // pred_region
      %174 = dma.done [#allocation6], 16
    $region65: #{tpu_custom_call.1} parent=1 // pred_fallthru
      _
    // Predicated region
    $region66: #{tpu_custom_call.1} parent=1 // pred_check
      _
    $region67: #{tpu_custom_call.1} parent=1 // pred_check_branch
      %176 = sbr.rel (0) target = $region69
    $region68: #{tpu_custom_call.1} parent=1 // pred_region
      %177 = dma.done [#allocation9], 256
    $region69: #{tpu_custom_call.1} parent=1 // pred_fallthru
      _
    // Predicated region
    $region70: #{tpu_custom_call.1} parent=1 // pred_check
      _
    $region71: #{tpu_custom_call.1} parent=1 // pred_check_branch
      %179 = sbr.rel (0) target = $region73
    $region72: #{tpu_custom_call.1} parent=1 // pred_region
      %180 = dma.done [#allocation9], 16
    $region73: #{tpu_custom_call.1} parent=1 // pred_fallthru
      _
    // Predicated region
    $region74: #{tpu_custom_call.1} parent=1 // pred_check
      _
    $region75: #{tpu_custom_call.1} parent=1 // pred_check_branch
      %182 = sbr.rel (0) target = $region77
    $region76: #{tpu_custom_call.1} parent=1 // pred_region
      %183 = dma.done [#allocation12], 16
    $region77: #{tpu_custom_call.1} parent=1 // pred_fallthru
      _
    // Predicated region
    $region78: #{tpu_custom_call.1} parent=1 // pred_check
      _
    $region79: #{tpu_custom_call.1} parent=1 // pred_check_branch
      %185 = sbr.rel (0) target = $region81
    $region80: #{tpu_custom_call.1} parent=1 // pred_region
      %186 = dma.done [#allocation12], 16
    $region81: #{tpu_custom_call.1} parent=1 // pred_fallthru
      _
    // Predicated region
    $region82: #{tpu_custom_call.1} parent=1 // pred_check
      _
    $region83: #{tpu_custom_call.1} parent=1 // pred_check_branch
      %188 = sbr.rel (0) target = $region85
    $region84: #{tpu_custom_call.1} parent=1 // pred_region
      %189 = dma.done [#allocation15], 256
    $region85: #{tpu_custom_call.1} parent=1 // pred_fallthru
      _
    // Predicated region
    $region86: #{tpu_custom_call.1} parent=1 // pred_check
      _
    $region87: #{tpu_custom_call.1} parent=1 // pred_check_branch
      %191 = sbr.rel (0) target = $region89
    $region88: #{tpu_custom_call.1} parent=1 // pred_region
      %192 = dma.done [#allocation15], 16
    $region89: #{tpu_custom_call.1} parent=1 // pred_fallthru
      _
    // Predicated region
    $region90: #{tpu_custom_call.1} parent=1 // pred_check
      _
    $region91: #{tpu_custom_call.1} parent=1 // pred_check_branch
      %194 = sbr.rel (0) target = $region93
    $region92: #{tpu_custom_call.1} parent=1 // pred_region
      %195 = dma.done [#allocation18], 1024
    $region93: #{tpu_custom_call.1} parent=1 // pred_fallthru
      _
    // Predicated region
    $region94: #{tpu_custom_call.1} parent=1 // pred_check
      _
    $region95: #{tpu_custom_call.1} parent=1 // pred_check_branch
      %197 = sbr.rel (0) target = $region97
    $region96: #{tpu_custom_call.1} parent=1 // pred_region
      %198 = dma.done [#allocation18], 16
    $region97: #{tpu_custom_call.1} parent=1 // pred_fallthru
      _
    // Predicated region
    $region98: #{tpu_custom_call.1} parent=1 // pred_check
      _
    $region99: #{tpu_custom_call.1} parent=1 // pred_check_branch
      %200 = sbr.rel (0) target = $region101
    $region100: #{tpu_custom_call.1} parent=1 // pred_region
      %201 = dma.done [#allocation21], 16
    $region101: #{tpu_custom_call.1} parent=1 // pred_fallthru
      _
    // Predicated region
    $region102: #{tpu_custom_call.1} parent=1 // pred_check
      _
    $region103: #{tpu_custom_call.1} parent=1 // pred_check_branch
      %203 = sbr.rel (0) target = $region105
    $region104: #{tpu_custom_call.1} parent=1 // pred_region
      %204 = dma.done [#allocation21], 16
    $region105: #{tpu_custom_call.1} parent=1 // pred_fallthru
      _
    %v206 = vld [vmem:[#allocation2] sm:$0xff]
    %v207 = vld [vmem:[#allocation2 + $0x8] sm:$0xff]
    %v208 = vpack.c.bf16 %v207, %v206
    %v209 = vld [vmem:[#allocation5] sm:$0xf]
    %v210 = vld [vmem:[#allocation5 + $0x4] sm:$0xf]
    %v211 = vld [vmem:[#allocation5 + $0x8] sm:$0xf]
    %v212 = vld [vmem:[#allocation5 + $0xc] sm:$0xf]
    %v213 = vld [vmem:[#allocation7] sm:$0x1]
    %v215 = vlaneseq
    %v216 = vshrl.u32 %v215, 7
    %v217 = vsub.s32 0, %v216
    %v218 = vrot.slane %v213, %v217
    %v224 = vunpack.c.l.b16 %v209
    %v225 = vunpack.c.l.b16 %v210
    %v226 = vunpack.c.l.b16 %v211
    %v227 = vunpack.c.l.b16 %v212
    %v228 = vpack.c.b16 %v225, %v224
    %v229 = vpack.c.b16 %v227, %v226
    %vm232 = vcmask 261120
    %v234 = vsel %vm232, %v208, 0
    %236 = vmatprep.subr.bf16.mxu0 0
    %237 = vmatpush1.bf16.msra.mxu0 %v228
    %238 = vmatprep.subr.bf16.mxu0 0
    %239 = vmatpush1.bf16.msra.mxu0 %v229
    %240 = vmatprep.subr.bf16.mxu0 0
    %241 = vmatpush1.bf16.msra.mxu0 0
    %242 = vmatprep.subr.bf16.mxu0 0
    %243 = vmatpush1.bf16.msra.mxu0 0
    %244 = vmatprep.subr.bf16.mxu0 0
    %245 = vmatpush1.bf16.msra.mxu0 0
    %246 = vmatprep.subr.bf16.mxu0 0
    %247 = vmatpush1.bf16.msra.mxu0 0
    %248 = vmatprep.subr.bf16.mxu0 0
    %249 = vmatpush1.bf16.msra.mxu0 0
    %250 = vmatprep.subr.bf16.mxu0 0
    %251 = vmatpush1.bf16.msra.mxu0 0
    %252 = vmatprep.subr.bf16.mxu0 0
    %253 = vmatpush1.bf16.msra.mxu0 0
    %254 = vmatprep.subr.bf16.mxu0 0
    %255 = vmatpush1.bf16.msra.mxu0 0
    %256 = vmatprep.subr.bf16.mxu0 0
    %257 = vmatpush1.bf16.msra.mxu0 0
    %258 = vmatprep.subr.bf16.mxu0 0
    %259 = vmatpush1.bf16.msra.mxu0 0
    %260 = vmatprep.subr.bf16.mxu0 0
    %261 = vmatpush1.bf16.msra.mxu0 0
    %262 = vmatprep.subr.bf16.mxu0 0
    %263 = vmatpush1.bf16.msra.mxu0 0
    %264 = vmatprep.subr.bf16.mxu0 0
    %265 = vmatpush1.bf16.msra.mxu0 0
    %266 = vmatprep.subr.bf16.mxu0 0
    %267 = vmatpush1.bf16.msra.mxu0 0
    %268 = vmatprep.mubr.bf16.mxu0 0
    %269 = vmatmul.mubr.bf16.gmra.mrb[0].mxu0 %v234
    %v270 = vpop.f32.mrb[0].mxu0
    %v271 = vadd.f32 %v218, %v270
    %v272 = vpop.f32.mrb[0].mxu0
    %v273 = vpop.f32.mrb[0].mxu0
    %v274 = vadd.f32 %v218, %v273
    %v275 = vpop.f32.mrb[0].mxu0
    %276 = vdwg.mxu0
    %v277 = vpack.c.bf16 %v271, %v271
    %v278 = vpack.c.bf16 %v274, %v274
    %280 = vrot.lane.b32.xlu0 %v277, 96
    %v281 = vpop.permute.xlu0 %280
    %vm282 = vcmask 64512
    %v284 = vsel %vm282, %v277, 0
    %v287 = vsel %vm282, %v281, 0
    %289 = vmatprep.subr.bf16.mxu0 0
    %290 = vmatpush1.bf16.xpose.msra.mxu0 %v287
    %291 = vmatprep.subr.bf16.mxu0 0
    %292 = vmatpush1.bf16.xpose.msra.mxu0 0
    %293 = vmatprep.subr.bf16.mxu0 0
    %294 = vmatpush1.bf16.xpose.msra.mxu0 0
    %295 = vmatprep.subr.bf16.mxu0 0
    %296 = vmatpush1.bf16.xpose.msra.mxu0 0
    %297 = vmatprep.subr.bf16.mxu0 0
    %298 = vmatpush1.bf16.xpose.msra.mxu0 0
    %299 = vmatprep.subr.bf16.mxu0 0
    %300 = vmatpush1.bf16.xpose.msra.mxu0 0
    %301 = vmatprep.subr.bf16.mxu0 0
    %302 = vmatpush1.bf16.xpose.msra.mxu0 0
    %303 = vmatprep.subr.bf16.mxu0 0
    %304 = vmatpush1.bf16.xpose.msra.mxu0 0
    %305 = vmatprep.subr.bf16.mxu0 0
    %306 = vmatpush1.bf16.xpose.msra.mxu0 0
    %307 = vmatprep.subr.bf16.mxu0 0
    %308 = vmatpush1.bf16.xpose.msra.mxu0 0
    %309 = vmatprep.subr.bf16.mxu0 0
    %310 = vmatpush1.bf16.xpose.msra.mxu0 0
    %311 = vmatprep.subr.bf16.mxu0 0
    %312 = vmatpush1.bf16.xpose.msra.mxu0 0
    %313 = vmatprep.subr.bf16.mxu0 0
    %314 = vmatpush1.bf16.xpose.msra.mxu0 0
    %315 = vmatprep.subr.bf16.mxu0 0
    %316 = vmatpush1.bf16.xpose.msra.mxu0 0
    %317 = vmatprep.subr.bf16.mxu0 0
    %318 = vmatpush1.bf16.xpose.msra.mxu0 0
    %319 = vmatprep.subr.bf16.mxu0 0
    %320 = vmatpush1.bf16.xpose.msra.mxu0 0
    %321 = vmatprep.mubr.bf16.mxu0 0
    %322 = vmatmul.mubr.bf16.gmra.mrb[0].mxu0 %v284
    %v323 = vpop.f32.mrb[0].mxu0
    %v324 = vadd.f32 0.0, %v323
    %v325 = vpop.f32.mrb[0].mxu0
    %v326 = vpop.f32.mrb[0].mxu0
    %v327 = vpop.f32.mrb[0].mxu0
    %328 = vdwg.mxu0
    %330 = vrot.lane.b32.xlu0 %v278, 96
    %v331 = vpop.permute.xlu0 %330
    %v333 = vsel %vm282, %v278, 0
    %v336 = vsel %vm282, %v331, 0
    %338 = vmatprep.subr.bf16.mxu0 0
    %339 = vmatpush1.bf16.xpose.msra.mxu0 %v336
    %340 = vmatprep.subr.bf16.mxu0 0
    %341 = vmatpush1.bf16.xpose.msra.mxu0 0
    %342 = vmatprep.subr.bf16.mxu0 0
    %343 = vmatpush1.bf16.xpose.msra.mxu0 0
    %344 = vmatprep.subr.bf16.mxu0 0
    %345 = vmatpush1.bf16.xpose.msra.mxu0 0
    %346 = vmatprep.subr.bf16.mxu0 0
    %347 = vmatpush1.bf16.xpose.msra.mxu0 0
    %348 = vmatprep.subr.bf16.mxu0 0
    %349 = vmatpush1.bf16.xpose.msra.mxu0 0
    %350 = vmatprep.subr.bf16.mxu0 0
    %351 = vmatpush1.bf16.xpose.msra.mxu0 0
    %352 = vmatprep.subr.bf16.mxu0 0
    %353 = vmatpush1.bf16.xpose.msra.mxu0 0
    %354 = vmatprep.subr.bf16.mxu0 0
    %355 = vmatpush1.bf16.xpose.msra.mxu0 0
    %356 = vmatprep.subr.bf16.mxu0 0
    %357 = vmatpush1.bf16.xpose.msra.mxu0 0
    %358 = vmatprep.subr.bf16.mxu0 0
    %359 = vmatpush1.bf16.xpose.msra.mxu0 0
    %360 = vmatprep.subr.bf16.mxu0 0
    %361 = vmatpush1.bf16.xpose.msra.mxu0 0
    %362 = vmatprep.subr.bf16.mxu0 0
    %363 = vmatpush1.bf16.xpose.msra.mxu0 0
    %364 = vmatprep.subr.bf16.mxu0 0
    %365 = vmatpush1.bf16.xpose.msra.mxu0 0
    %366 = vmatprep.subr.bf16.mxu0 0
    %367 = vmatpush1.bf16.xpose.msra.mxu0 0
    %368 = vmatprep.subr.bf16.mxu0 0
    %369 = vmatpush1.bf16.xpose.msra.mxu0 0
    %370 = vmatprep.mubr.bf16.mxu0 0
    %371 = vmatmul.mubr.bf16.gmra.mrb[0].mxu0 %v333
    %v372 = vpop.f32.mrb[0].mxu0
    %v373 = vadd.f32 0.0, %v372
    %v374 = vpop.f32.mrb[0].mxu0
    %v375 = vpop.f32.mrb[0].mxu0
    %v376 = vpop.f32.mrb[0].mxu0
    %377 = vdwg.mxu0
    %v378 = vsel %vm282, %v324, -inf
    %379 = vmax.xlane.f32.xlu0 %v378
    %v380 = vpop.xlane.xlu0 %379
    %v381 = vsel %vm282, %v373, -inf
    %382 = vmax.xlane.f32.xlu0 %v381
    %v383 = vpop.xlane.xlu0 %382
    %v384 = vsub.f32 %v324, %v380
    %v385 = vsub.f32 %v373, %v383
    %v386 = vmul.f32 %v384, 1.442695
    %v387 = vpow.pop %v386
    %v388 = vmul.f32 %v385, 1.442695
    %v389 = vpow.pop %v388
    %v390 = vsel %vm282, %v387, 0.0
    %391 = vadd.xlane.f32.xlu0 %v390
    %v392 = vpop.xlane.xlu0 %391
    %v393 = vsel %vm282, %v389, 0.0
    %394 = vadd.xlane.f32.xlu0 %v393
    %v395 = vpop.xlane.xlu0 %394
    %v396 = vrcp.pop %v392
    %v397 = vrcp.pop %v395
    %v398 = vmul.f32 %v387, %v396
    %v399 = vmul.f32 %v389, %v397
    %v400 = vpack.c.bf16 %v398, %v398
    %v401 = vpack.c.bf16 %v399, %v399
    %402 = vrot.lane.b32.xlu0 %v277, 64
    %v403 = vpop.permute.xlu0 %402
    %v405 = vsel %vm282, %v400, 0
    %vm407 = vcmask 1043456
    %v409 = vsel %vm407, %v403, 0
    %411 = vmatprep.subr.bf16.mxu0 0
    %412 = vmatpush1.bf16.msra.mxu0 %v409
    %413 = vmatprep.subr.bf16.mxu0 0
    %414 = vmatpush1.bf16.msra.mxu0 0
    %415 = vmatprep.subr.bf16.mxu0 0
    %416 = vmatpush1.bf16.msra.mxu0 0
    %417 = vmatprep.subr.bf16.mxu0 0
    %418 = vmatpush1.bf16.msra.mxu0 0
    %419 = vmatprep.subr.bf16.mxu0 0
    %420 = vmatpush1.bf16.msra.mxu0 0
    %421 = vmatprep.subr.bf16.mxu0 0
    %422 = vmatpush1.bf16.msra.mxu0 0
    %423 = vmatprep.subr.bf16.mxu0 0
    %424 = vmatpush1.bf16.msra.mxu0 0
    %425 = vmatprep.subr.bf16.mxu0 0
    %426 = vmatpush1.bf16.msra.mxu0 0
    %427 = vmatprep.subr.bf16.mxu0 0
    %428 = vmatpush1.bf16.msra.mxu0 0
    %429 = vmatprep.subr.bf16.mxu0 0
    %430 = vmatpush1.bf16.msra.mxu0 0
    %431 = vmatprep.subr.bf16.mxu0 0
    %432 = vmatpush1.bf16.msra.mxu0 0
    %433 = vmatprep.subr.bf16.mxu0 0
    %434 = vmatpush1.bf16.msra.mxu0 0
    %435 = vmatprep.subr.bf16.mxu0 0
    %436 = vmatpush1.bf16.msra.mxu0 0
    %437 = vmatprep.subr.bf16.mxu0 0
    %438 = vmatpush1.bf16.msra.mxu0 0
    %439 = vmatprep.subr.bf16.mxu0 0
    %440 = vmatpush1.bf16.msra.mxu0 0
    %441 = vmatprep.subr.bf16.mxu0 0
    %442 = vmatpush1.bf16.msra.mxu0 0
    %443 = vmatprep.mubr.bf16.mxu0 0
    %444 = vmatmul.mubr.bf16.gmra.mrb[0].mxu0 %v405
    %v445 = vpop.f32.mrb[0].mxu0
    %v446 = vadd.f32 0.0, %v445
    %v447 = vpop.f32.mrb[0].mxu0
    %v448 = vpop.f32.mrb[0].mxu0
    %v449 = vpop.f32.mrb[0].mxu0
    %450 = vdwg.mxu0
    %451 = vrot.lane.b32.xlu0 %v278, 64
    %v452 = vpop.permute.xlu0 %451
    %v454 = vsel %vm282, %v401, 0
    %v457 = vsel %vm407, %v452, 0
    %459 = vmatprep.subr.bf16.mxu0 0
    %460 = vmatpush1.bf16.msra.mxu0 %v457
    %461 = vmatprep.subr.bf16.mxu0 0
    %462 = vmatpush1.bf16.msra.mxu0 0
    %463 = vmatprep.subr.bf16.mxu0 0
    %464 = vmatpush1.bf16.msra.mxu0 0
    %465 = vmatprep.subr.bf16.mxu0 0
    %466 = vmatpush1.bf16.msra.mxu0 0
    %467 = vmatprep.subr.bf16.mxu0 0
    %468 = vmatpush1.bf16.msra.mxu0 0
    %469 = vmatprep.subr.bf16.mxu0 0
    %470 = vmatpush1.bf16.msra.mxu0 0
    %471 = vmatprep.subr.bf16.mxu0 0
    %472 = vmatpush1.bf16.msra.mxu0 0
    %473 = vmatprep.subr.bf16.mxu0 0
    %474 = vmatpush1.bf16.msra.mxu0 0
    %475 = vmatprep.subr.bf16.mxu0 0
    %476 = vmatpush1.bf16.msra.mxu0 0
    %477 = vmatprep.subr.bf16.mxu0 0
    %478 = vmatpush1.bf16.msra.mxu0 0
    %479 = vmatprep.subr.bf16.mxu0 0
    %480 = vmatpush1.bf16.msra.mxu0 0
    %481 = vmatprep.subr.bf16.mxu0 0
    %482 = vmatpush1.bf16.msra.mxu0 0
    %483 = vmatprep.subr.bf16.mxu0 0
    %484 = vmatpush1.bf16.msra.mxu0 0
    %485 = vmatprep.subr.bf16.mxu0 0
    %486 = vmatpush1.bf16.msra.mxu0 0
    %487 = vmatprep.subr.bf16.mxu0 0
    %488 = vmatpush1.bf16.msra.mxu0 0
    %489 = vmatprep.subr.bf16.mxu0 0
    %490 = vmatpush1.bf16.msra.mxu0 0
    %491 = vmatprep.mubr.bf16.mxu0 0
    %492 = vmatmul.mubr.bf16.gmra.mrb[0].mxu0 %v454
    %v493 = vpop.f32.mrb[0].mxu0
    %v494 = vadd.f32 0.0, %v493
    %v495 = vpop.f32.mrb[0].mxu0
    %v496 = vpop.f32.mrb[0].mxu0
    %v497 = vpop.f32.mrb[0].mxu0
    %498 = vdwg.mxu0
    %499 = vrot.lane.b32.xlu0 %v277, 120
    %v500 = vpop.permute.xlu0 %499
    %501 = vrot.lane.b32.xlu0 %v277, 88
    %v502 = vpop.permute.xlu0 %501
    %v504 = vsel %vm282, %v500, 0
    %v507 = vsel %vm282, %v502, 0
    %509 = vmatprep.subr.bf16.mxu0 0
    %510 = vmatpush1.bf16.xpose.msra.mxu0 %v507
    %511 = vmatprep.subr.bf16.mxu0 0
    %512 = vmatpush1.bf16.xpose.msra.mxu0 0
    %513 = vmatprep.subr.bf16.mxu0 0
    %514 = vmatpush1.bf16.xpose.msra.mxu0 0
    %515 = vmatprep.subr.bf16.mxu0 0
    %516 = vmatpush1.bf16.xpose.msra.mxu0 0
    %517 = vmatprep.subr.bf16.mxu0 0
    %518 = vmatpush1.bf16.xpose.msra.mxu0 0
    %519 = vmatprep.subr.bf16.mxu0 0
    %520 = vmatpush1.bf16.xpose.msra.mxu0 0
    %521 = vmatprep.subr.bf16.mxu0 0
    %522 = vmatpush1.bf16.xpose.msra.mxu0 0
    %523 = vmatprep.subr.bf16.mxu0 0
    %524 = vmatpush1.bf16.xpose.msra.mxu0 0
    %525 = vmatprep.subr.bf16.mxu0 0
    %526 = vmatpush1.bf16.xpose.msra.mxu0 0
    %527 = vmatprep.subr.bf16.mxu0 0
    %528 = vmatpush1.bf16.xpose.msra.mxu0 0
    %529 = vmatprep.subr.bf16.mxu0 0
    %530 = vmatpush1.bf16.xpose.msra.mxu0 0
    %531 = vmatprep.subr.bf16.mxu0 0
    %532 = vmatpush1.bf16.xpose.msra.mxu0 0
    %533 = vmatprep.subr.bf16.mxu0 0
    %534 = vmatpush1.bf16.xpose.msra.mxu0 0
    %535 = vmatprep.subr.bf16.mxu0 0
    %536 = vmatpush1.bf16.xpose.msra.mxu0 0
    %537 = vmatprep.subr.bf16.mxu0 0
    %538 = vmatpush1.bf16.xpose.msra.mxu0 0
    %539 = vmatprep.subr.bf16.mxu0 0
    %540 = vmatpush1.bf16.xpose.msra.mxu0 0
    %541 = vmatprep.mubr.bf16.mxu0 0
    %542 = vmatmul.mubr.bf16.gmra.mrb[0].mxu0 %v504
    %v543 = vpop.f32.mrb[0].mxu0
    %v544 = vadd.f32 0.0, %v543
    %v545 = vpop.f32.mrb[0].mxu0
    %v546 = vpop.f32.mrb[0].mxu0
    %v547 = vpop.f32.mrb[0].mxu0
    %548 = vdwg.mxu0
    %549 = vrot.lane.b32.xlu0 %v278, 120
    %v550 = vpop.permute.xlu0 %549
    %551 = vrot.lane.b32.xlu0 %v278, 88
    %v552 = vpop.permute.xlu0 %551
    %v554 = vsel %vm282, %v550, 0
    %v557 = vsel %vm282, %v552, 0
    %559 = vmatprep.subr.bf16.mxu0 0
    %560 = vmatpush1.bf16.xpose.msra.mxu0 %v557
    %561 = vmatprep.subr.bf16.mxu0 0
    %562 = vmatpush1.bf16.xpose.msra.mxu0 0
    %563 = vmatprep.subr.bf16.mxu0 0
    %564 = vmatpush1.bf16.xpose.msra.mxu0 0
    %565 = vmatprep.subr.bf16.mxu0 0
    %566 = vmatpush1.bf16.xpose.msra.mxu0 0
    %567 = vmatprep.subr.bf16.mxu0 0
    %568 = vmatpush1.bf16.xpose.msra.mxu0 0
    %569 = vmatprep.subr.bf16.mxu0 0
    %570 = vmatpush1.bf16.xpose.msra.mxu0 0
    %571 = vmatprep.subr.bf16.mxu0 0
    %572 = vmatpush1.bf16.xpose.msra.mxu0 0
    %573 = vmatprep.subr.bf16.mxu0 0
    %574 = vmatpush1.bf16.xpose.msra.mxu0 0
    %575 = vmatprep.subr.bf16.mxu0 0
    %576 = vmatpush1.bf16.xpose.msra.mxu0 0
    %577 = vmatprep.subr.bf16.mxu0 0
    %578 = vmatpush1.bf16.xpose.msra.mxu0 0
    %579 = vmatprep.subr.bf16.mxu0 0
    %580 = vmatpush1.bf16.xpose.msra.mxu0 0
    %581 = vmatprep.subr.bf16.mxu0 0
    %582 = vmatpush1.bf16.xpose.msra.mxu0 0
    %583 = vmatprep.subr.bf16.mxu0 0
    %584 = vmatpush1.bf16.xpose.msra.mxu0 0
    %585 = vmatprep.subr.bf16.mxu0 0
    %586 = vmatpush1.bf16.xpose.msra.mxu0 0
    %587 = vmatprep.subr.bf16.mxu0 0
    %588 = vmatpush1.bf16.xpose.msra.mxu0 0
    %589 = vmatprep.subr.bf16.mxu0 0
    %590 = vmatpush1.bf16.xpose.msra.mxu0 0
    %591 = vmatprep.mubr.bf16.mxu0 0
    %592 = vmatmul.mubr.bf16.gmra.mrb[0].mxu0 %v554
    %v593 = vpop.f32.mrb[0].mxu0
    %v594 = vadd.f32 0.0, %v593
    %v595 = vpop.f32.mrb[0].mxu0
    %v596 = vpop.f32.mrb[0].mxu0
    %v597 = vpop.f32.mrb[0].mxu0
    %598 = vdwg.mxu0
    %v599 = vsel %vm282, %v544, -inf
    %600 = vmax.xlane.f32.xlu0 %v599
    %v601 = vpop.xlane.xlu0 %600
    %v602 = vsel %vm282, %v594, -inf
    %603 = vmax.xlane.f32.xlu0 %v602
    %v604 = vpop.xlane.xlu0 %603
    %v605 = vsub.f32 %v544, %v601
    %v606 = vsub.f32 %v594, %v604
    %v607 = vmul.f32 %v605, 1.442695
    %v608 = vpow.pop %v607
    %v609 = vmul.f32 %v606, 1.442695
    %v610 = vpow.pop %v609
    %v611 = vsel %vm282, %v608, 0.0
    %612 = vadd.xlane.f32.xlu0 %v611
    %v613 = vpop.xlane.xlu0 %612
    %v614 = vsel %vm282, %v610, 0.0
    %615 = vadd.xlane.f32.xlu0 %v614
    %v616 = vpop.xlane.xlu0 %615
    %v617 = vrcp.pop %v613
    %v618 = vrcp.pop %v616
    %v619 = vmul.f32 %v608, %v617
    %v620 = vmul.f32 %v610, %v618
    %v621 = vpack.c.bf16 %v619, %v619
    %v622 = vpack.c.bf16 %v620, %v620
    %623 = vrot.lane.b32.xlu0 %v277, 56
    %v624 = vpop.permute.xlu0 %623
    %v626 = vsel %vm282, %v621, 0
    %v629 = vsel %vm407, %v624, 0
    %631 = vmatprep.subr.bf16.mxu0 0
    %632 = vmatpush1.bf16.msra.mxu0 %v629
    %633 = vmatprep.subr.bf16.mxu0 0
    %634 = vmatpush1.bf16.msra.mxu0 0
    %635 = vmatprep.subr.bf16.mxu0 0
    %636 = vmatpush1.bf16.msra.mxu0 0
    %637 = vmatprep.subr.bf16.mxu0 0
    %638 = vmatpush1.bf16.msra.mxu0 0
    %639 = vmatprep.subr.bf16.mxu0 0
    %640 = vmatpush1.bf16.msra.mxu0 0
    %641 = vmatprep.subr.bf16.mxu0 0
    %642 = vmatpush1.bf16.msra.mxu0 0
    %643 = vmatprep.subr.bf16.mxu0 0
    %644 = vmatpush1.bf16.msra.mxu0 0
    %645 = vmatprep.subr.bf16.mxu0 0
    %646 = vmatpush1.bf16.msra.mxu0 0
    %647 = vmatprep.subr.bf16.mxu0 0
    %648 = vmatpush1.bf16.msra.mxu0 0
    %649 = vmatprep.subr.bf16.mxu0 0
    %650 = vmatpush1.bf16.msra.mxu0 0
    %651 = vmatprep.subr.bf16.mxu0 0
    %652 = vmatpush1.bf16.msra.mxu0 0
    %653 = vmatprep.subr.bf16.mxu0 0
    %654 = vmatpush1.bf16.msra.mxu0 0
    %655 = vmatprep.subr.bf16.mxu0 0
    %656 = vmatpush1.bf16.msra.mxu0 0
    %657 = vmatprep.subr.bf16.mxu0 0
    %658 = vmatpush1.bf16.msra.mxu0 0
    %659 = vmatprep.subr.bf16.mxu0 0
    %660 = vmatpush1.bf16.msra.mxu0 0
    %661 = vmatprep.subr.bf16.mxu0 0
    %662 = vmatpush1.bf16.msra.mxu0 0
    %663 = vmatprep.mubr.bf16.mxu0 0
    %664 = vmatmul.mubr.bf16.gmra.mrb[0].mxu0 %v626
    %v665 = vpop.f32.mrb[0].mxu0
    %v666 = vadd.f32 0.0, %v665
    %v667 = vpop.f32.mrb[0].mxu0
    %v668 = vpop.f32.mrb[0].mxu0
    %v669 = vpop.f32.mrb[0].mxu0
    %670 = vdwg.mxu0
    %671 = vrot.lane.b32.xlu0 %v278, 56
    %v672 = vpop.permute.xlu0 %671
    %v674 = vsel %vm282, %v622, 0
    %v677 = vsel %vm407, %v672, 0
    %679 = vmatprep.subr.bf16.mxu0 0
    %680 = vmatpush1.bf16.msra.mxu0 %v677
    %681 = vmatprep.subr.bf16.mxu0 0
    %682 = vmatpush1.bf16.msra.mxu0 0
    %683 = vmatprep.subr.bf16.mxu0 0
    %684 = vmatpush1.bf16.msra.mxu0 0
    %685 = vmatprep.subr.bf16.mxu0 0
    %686 = vmatpush1.bf16.msra.mxu0 0
    %687 = vmatprep.subr.bf16.mxu0 0
    %688 = vmatpush1.bf16.msra.mxu0 0
    %689 = vmatprep.subr.bf16.mxu0 0
    %690 = vmatpush1.bf16.msra.mxu0 0
    %691 = vmatprep.subr.bf16.mxu0 0
    %692 = vmatpush1.bf16.msra.mxu0 0
    %693 = vmatprep.subr.bf16.mxu0 0
    %694 = vmatpush1.bf16.msra.mxu0 0
    %695 = vmatprep.subr.bf16.mxu0 0
    %696 = vmatpush1.bf16.msra.mxu0 0
    %697 = vmatprep.subr.bf16.mxu0 0
    %698 = vmatpush1.bf16.msra.mxu0 0
    %699 = vmatprep.subr.bf16.mxu0 0
    %700 = vmatpush1.bf16.msra.mxu0 0
    %701 = vmatprep.subr.bf16.mxu0 0
    %702 = vmatpush1.bf16.msra.mxu0 0
    %703 = vmatprep.subr.bf16.mxu0 0
    %704 = vmatpush1.bf16.msra.mxu0 0
    %705 = vmatprep.subr.bf16.mxu0 0
    %706 = vmatpush1.bf16.msra.mxu0 0
    %707 = vmatprep.subr.bf16.mxu0 0
    %708 = vmatpush1.bf16.msra.mxu0 0
    %709 = vmatprep.subr.bf16.mxu0 0
    %710 = vmatpush1.bf16.msra.mxu0 0
    %711 = vmatprep.mubr.bf16.mxu0 0
    %712 = vmatmul.mubr.bf16.gmra.mrb[0].mxu0 %v674
    %v713 = vpop.f32.mrb[0].mxu0
    %v714 = vadd.f32 0.0, %v713
    %v715 = vpop.f32.mrb[0].mxu0
    %v716 = vpop.f32.mrb[0].mxu0
    %v717 = vpop.f32.mrb[0].mxu0
    %718 = vdwg.mxu0
    %719 = vrot.lane.b32.xlu0 %v277, 112
    %v720 = vpop.permute.xlu0 %719
    %721 = vrot.lane.b32.xlu0 %v277, 80
    %v722 = vpop.permute.xlu0 %721
    %v724 = vsel %vm282, %v720, 0
    %v727 = vsel %vm282, %v722, 0
    %729 = vmatprep.subr.bf16.mxu0 0
    %730 = vmatpush1.bf16.xpose.msra.mxu0 %v727
    %731 = vmatprep.subr.bf16.mxu0 0
    %732 = vmatpush1.bf16.xpose.msra.mxu0 0
    %733 = vmatprep.subr.bf16.mxu0 0
    %734 = vmatpush1.bf16.xpose.msra.mxu0 0
    %735 = vmatprep.subr.bf16.mxu0 0
    %736 = vmatpush1.bf16.xpose.msra.mxu0 0
    %737 = vmatprep.subr.bf16.mxu0 0
    %738 = vmatpush1.bf16.xpose.msra.mxu0 0
    %739 = vmatprep.subr.bf16.mxu0 0
    %740 = vmatpush1.bf16.xpose.msra.mxu0 0
    %741 = vmatprep.subr.bf16.mxu0 0
    %742 = vmatpush1.bf16.xpose.msra.mxu0 0
    %743 = vmatprep.subr.bf16.mxu0 0
    %744 = vmatpush1.bf16.xpose.msra.mxu0 0
    %745 = vmatprep.subr.bf16.mxu0 0
    %746 = vmatpush1.bf16.xpose.msra.mxu0 0
    %747 = vmatprep.subr.bf16.mxu0 0
    %748 = vmatpush1.bf16.xpose.msra.mxu0 0
    %749 = vmatprep.subr.bf16.mxu0 0
    %750 = vmatpush1.bf16.xpose.msra.mxu0 0
    %751 = vmatprep.subr.bf16.mxu0 0
    %752 = vmatpush1.bf16.xpose.msra.mxu0 0
    %753 = vmatprep.subr.bf16.mxu0 0
    %754 = vmatpush1.bf16.xpose.msra.mxu0 0
    %755 = vmatprep.subr.bf16.mxu0 0
    %756 = vmatpush1.bf16.xpose.msra.mxu0 0
    %757 = vmatprep.subr.bf16.mxu0 0
    %758 = vmatpush1.bf16.xpose.msra.mxu0 0
    %759 = vmatprep.subr.bf16.mxu0 0
    %760 = vmatpush1.bf16.xpose.msra.mxu0 0
    %761 = vmatprep.mubr.bf16.mxu0 0
    %762 = vmatmul.mubr.bf16.gmra.mrb[0].mxu0 %v724
    %v763 = vpop.f32.mrb[0].mxu0
    %v764 = vadd.f32 0.0, %v763
    %v765 = vpop.f32.mrb[0].mxu0
    %v766 = vpop.f32.mrb[0].mxu0
    %v767 = vpop.f32.mrb[0].mxu0
    %768 = vdwg.mxu0
    %769 = vrot.lane.b32.xlu0 %v278, 112
    %v770 = vpop.permute.xlu0 %769
    %771 = vrot.lane.b32.xlu0 %v278, 80
    %v772 = vpop.permute.xlu0 %771
    %v774 = vsel %vm282, %v770, 0
    %v777 = vsel %vm282, %v772, 0
    %779 = vmatprep.subr.bf16.mxu0 0
    %780 = vmatpush1.bf16.xpose.msra.mxu0 %v777
    %781 = vmatprep.subr.bf16.mxu0 0
    %782 = vmatpush1.bf16.xpose.msra.mxu0 0
    %783 = vmatprep.subr.bf16.mxu0 0
    %784 = vmatpush1.bf16.xpose.msra.mxu0 0
    %785 = vmatprep.subr.bf16.mxu0 0
    %786 = vmatpush1.bf16.xpose.msra.mxu0 0
    %787 = vmatprep.subr.bf16.mxu0 0
    %788 = vmatpush1.bf16.xpose.msra.mxu0 0
    %789 = vmatprep.subr.bf16.mxu0 0
    %790 = vmatpush1.bf16.xpose.msra.mxu0 0
    %791 = vmatprep.subr.bf16.mxu0 0
    %792 = vmatpush1.bf16.xpose.msra.mxu0 0
    %793 = vmatprep.subr.bf16.mxu0 0
    %794 = vmatpush1.bf16.xpose.msra.mxu0 0
    %795 = vmatprep.subr.bf16.mxu0 0
    %796 = vmatpush1.bf16.xpose.msra.mxu0 0
    %797 = vmatprep.subr.bf16.mxu0 0
    %798 = vmatpush1.bf16.xpose.msra.mxu0 0
    %799 = vmatprep.subr.bf16.mxu0 0
    %800 = vmatpush1.bf16.xpose.msra.mxu0 0
    %801 = vmatprep.subr.bf16.mxu0 0
    %802 = vmatpush1.bf16.xpose.msra.mxu0 0
    %803 = vmatprep.subr.bf16.mxu0 0
    %804 = vmatpush1.bf16.xpose.msra.mxu0 0
    %805 = vmatprep.subr.bf16.mxu0 0
    %806 = vmatpush1.bf16.xpose.msra.mxu0 0
    %807 = vmatprep.subr.bf16.mxu0 0
    %808 = vmatpush1.bf16.xpose.msra.mxu0 0
    %809 = vmatprep.subr.bf16.mxu0 0
    %810 = vmatpush1.bf16.xpose.msra.mxu0 0
    %811 = vmatprep.mubr.bf16.mxu0 0
    %812 = vmatmul.mubr.bf16.gmra.mrb[0].mxu0 %v774
    %v813 = vpop.f32.mrb[0].mxu0
    %v814 = vadd.f32 0.0, %v813
    %v815 = vpop.f32.mrb[0].mxu0
    %v816 = vpop.f32.mrb[0].mxu0
    %v817 = vpop.f32.mrb[0].mxu0
    %818 = vdwg.mxu0
    %v819 = vsel %vm282, %v764, -inf
    %820 = vmax.xlane.f32.xlu0 %v819
    %v821 = vpop.xlane.xlu0 %820
    %v822 = vsel %vm282, %v814, -inf
    %823 = vmax.xlane.f32.xlu0 %v822
    %v824 = vpop.xlane.xlu0 %823
    %v825 = vsub.f32 %v764, %v821
    %v826 = vsub.f32 %v814, %v824
    %v827 = vmul.f32 %v825, 1.442695
    %v828 = vpow.pop %v827
    %v829 = vmul.f32 %v826, 1.442695
    %v830 = vpow.pop %v829
    %v831 = vsel %vm282, %v828, 0.0
    %832 = vadd.xlane.f32.xlu0 %v831
    %v833 = vpop.xlane.xlu0 %832
    %v834 = vsel %vm282, %v830, 0.0
    %835 = vadd.xlane.f32.xlu0 %v834
    %v836 = vpop.xlane.xlu0 %835
    %v837 = vrcp.pop %v833
    %v838 = vrcp.pop %v836
    %v839 = vmul.f32 %v828, %v837
    %v840 = vmul.f32 %v830, %v838
    %v841 = vpack.c.bf16 %v839, %v839
    %v842 = vpack.c.bf16 %v840, %v840
    %843 = vrot.lane.b32.xlu0 %v277, 48
    %v844 = vpop.permute.xlu0 %843
    %v846 = vsel %vm282, %v841, 0
    %v849 = vsel %vm407, %v844, 0
    %851 = vmatprep.subr.bf16.mxu0 0
    %852 = vmatpush1.bf16.msra.mxu0 %v849
    %853 = vmatprep.subr.bf16.mxu0 0
    %854 = vmatpush1.bf16.msra.mxu0 0
    %855 = vmatprep.subr.bf16.mxu0 0
    %856 = vmatpush1.bf16.msra.mxu0 0
    %857 = vmatprep.subr.bf16.mxu0 0
    %858 = vmatpush1.bf16.msra.mxu0 0
    %859 = vmatprep.subr.bf16.mxu0 0
    %860 = vmatpush1.bf16.msra.mxu0 0
    %861 = vmatprep.subr.bf16.mxu0 0
    %862 = vmatpush1.bf16.msra.mxu0 0
    %863 = vmatprep.subr.bf16.mxu0 0
    %864 = vmatpush1.bf16.msra.mxu0 0
    %865 = vmatprep.subr.bf16.mxu0 0
    %866 = vmatpush1.bf16.msra.mxu0 0
    %867 = vmatprep.subr.bf16.mxu0 0
    %868 = vmatpush1.bf16.msra.mxu0 0
    %869 = vmatprep.subr.bf16.mxu0 0
    %870 = vmatpush1.bf16.msra.mxu0 0
    %871 = vmatprep.subr.bf16.mxu0 0
    %872 = vmatpush1.bf16.msra.mxu0 0
    %873 = vmatprep.subr.bf16.mxu0 0
    %874 = vmatpush1.bf16.msra.mxu0 0
    %875 = vmatprep.subr.bf16.mxu0 0
    %876 = vmatpush1.bf16.msra.mxu0 0
    %877 = vmatprep.subr.bf16.mxu0 0
    %878 = vmatpush1.bf16.msra.mxu0 0
    %879 = vmatprep.subr.bf16.mxu0 0
    %880 = vmatpush1.bf16.msra.mxu0 0
    %881 = vmatprep.subr.bf16.mxu0 0
    %882 = vmatpush1.bf16.msra.mxu0 0
    %883 = vmatprep.mubr.bf16.mxu0 0
    %884 = vmatmul.mubr.bf16.gmra.mrb[0].mxu0 %v846
    %v885 = vpop.f32.mrb[0].mxu0
    %v886 = vadd.f32 0.0, %v885
    %v887 = vpop.f32.mrb[0].mxu0
    %v888 = vpop.f32.mrb[0].mxu0
    %v889 = vpop.f32.mrb[0].mxu0
    %890 = vdwg.mxu0
    %891 = vrot.lane.b32.xlu0 %v278, 48
    %v892 = vpop.permute.xlu0 %891
    %v894 = vsel %vm282, %v842, 0
    %v897 = vsel %vm407, %v892, 0
    %899 = vmatprep.subr.bf16.mxu0 0
    %900 = vmatpush1.bf16.msra.mxu0 %v897
    %901 = vmatprep.subr.bf16.mxu0 0
    %902 = vmatpush1.bf16.msra.mxu0 0
    %903 = vmatprep.subr.bf16.mxu0 0
    %904 = vmatpush1.bf16.msra.mxu0 0
    %905 = vmatprep.subr.bf16.mxu0 0
    %906 = vmatpush1.bf16.msra.mxu0 0
    %907 = vmatprep.subr.bf16.mxu0 0
    %908 = vmatpush1.bf16.msra.mxu0 0
    %909 = vmatprep.subr.bf16.mxu0 0
    %910 = vmatpush1.bf16.msra.mxu0 0
    %911 = vmatprep.subr.bf16.mxu0 0
    %912 = vmatpush1.bf16.msra.mxu0 0
    %913 = vmatprep.subr.bf16.mxu0 0
    %914 = vmatpush1.bf16.msra.mxu0 0
    %915 = vmatprep.subr.bf16.mxu0 0
    %916 = vmatpush1.bf16.msra.mxu0 0
    %917 = vmatprep.subr.bf16.mxu0 0
    %918 = vmatpush1.bf16.msra.mxu0 0
    %919 = vmatprep.subr.bf16.mxu0 0
    %920 = vmatpush1.bf16.msra.mxu0 0
    %921 = vmatprep.subr.bf16.mxu0 0
    %922 = vmatpush1.bf16.msra.mxu0 0
    %923 = vmatprep.subr.bf16.mxu0 0
    %924 = vmatpush1.bf16.msra.mxu0 0
    %925 = vmatprep.subr.bf16.mxu0 0
    %926 = vmatpush1.bf16.msra.mxu0 0
    %927 = vmatprep.subr.bf16.mxu0 0
    %928 = vmatpush1.bf16.msra.mxu0 0
    %929 = vmatprep.subr.bf16.mxu0 0
    %930 = vmatpush1.bf16.msra.mxu0 0
    %931 = vmatprep.mubr.bf16.mxu0 0
    %932 = vmatmul.mubr.bf16.gmra.mrb[0].mxu0 %v894
    %v933 = vpop.f32.mrb[0].mxu0
    %v934 = vadd.f32 0.0, %v933
    %v935 = vpop.f32.mrb[0].mxu0
    %v936 = vpop.f32.mrb[0].mxu0
    %v937 = vpop.f32.mrb[0].mxu0
    %938 = vdwg.mxu0
    %939 = vrot.lane.b32.xlu0 %v277, 104
    %v940 = vpop.permute.xlu0 %939
    %941 = vrot.lane.b32.xlu0 %v277, 72
    %v942 = vpop.permute.xlu0 %941
    %v944 = vsel %vm282, %v940, 0
    %v947 = vsel %vm282, %v942, 0
    %949 = vmatprep.subr.bf16.mxu0 0
    %950 = vmatpush1.bf16.xpose.msra.mxu0 %v947
    %951 = vmatprep.subr.bf16.mxu0 0
    %952 = vmatpush1.bf16.xpose.msra.mxu0 0
    %953 = vmatprep.subr.bf16.mxu0 0
    %954 = vmatpush1.bf16.xpose.msra.mxu0 0
    %955 = vmatprep.subr.bf16.mxu0 0
    %956 = vmatpush1.bf16.xpose.msra.mxu0 0
    %957 = vmatprep.subr.bf16.mxu0 0
    %958 = vmatpush1.bf16.xpose.msra.mxu0 0
    %959 = vmatprep.subr.bf16.mxu0 0
    %960 = vmatpush1.bf16.xpose.msra.mxu0 0
    %961 = vmatprep.subr.bf16.mxu0 0
    %962 = vmatpush1.bf16.xpose.msra.mxu0 0
    %963 = vmatprep.subr.bf16.mxu0 0
    %964 = vmatpush1.bf16.xpose.msra.mxu0 0
    %965 = vmatprep.subr.bf16.mxu0 0
    %966 = vmatpush1.bf16.xpose.msra.mxu0 0
    %967 = vmatprep.subr.bf16.mxu0 0
    %968 = vmatpush1.bf16.xpose.msra.mxu0 0
    %969 = vmatprep.subr.bf16.mxu0 0
    %970 = vmatpush1.bf16.xpose.msra.mxu0 0
    %971 = vmatprep.subr.bf16.mxu0 0
    %972 = vmatpush1.bf16.xpose.msra.mxu0 0
    %973 = vmatprep.subr.bf16.mxu0 0
    %974 = vmatpush1.bf16.xpose.msra.mxu0 0
    %975 = vmatprep.subr.bf16.mxu0 0
    %976 = vmatpush1.bf16.xpose.msra.mxu0 0
    %977 = vmatprep.subr.bf16.mxu0 0
    %978 = vmatpush1.bf16.xpose.msra.mxu0 0
    %979 = vmatprep.subr.bf16.mxu0 0
    %980 = vmatpush1.bf16.xpose.msra.mxu0 0
    %981 = vmatprep.mubr.bf16.mxu0 0
    %982 = vmatmul.mubr.bf16.gmra.mrb[0].mxu0 %v944
    %v983 = vpop.f32.mrb[0].mxu0
    %v984 = vadd.f32 0.0, %v983
    %v985 = vpop.f32.mrb[0].mxu0
    %v986 = vpop.f32.mrb[0].mxu0
    %v987 = vpop.f32.mrb[0].mxu0
    %988 = vdwg.mxu0
    %989 = vrot.lane.b32.xlu0 %v278, 104
    %v990 = vpop.permute.xlu0 %989
    %991 = vrot.lane.b32.xlu0 %v278, 72
    %v992 = vpop.permute.xlu0 %991
    %v994 = vsel %vm282, %v990, 0
    %v997 = vsel %vm282, %v992, 0
    %999 = vmatprep.subr.bf16.mxu0 0
    %1000 = vmatpush1.bf16.xpose.msra.mxu0 %v997
    %1001 = vmatprep.subr.bf16.mxu0 0
    %1002 = vmatpush1.bf16.xpose.msra.mxu0 0
    %1003 = vmatprep.subr.bf16.mxu0 0
    %1004 = vmatpush1.bf16.xpose.msra.mxu0 0
    %1005 = vmatprep.subr.bf16.mxu0 0
    %1006 = vmatpush1.bf16.xpose.msra.mxu0 0
    %1007 = vmatprep.subr.bf16.mxu0 0
    %1008 = vmatpush1.bf16.xpose.msra.mxu0 0
    %1009 = vmatprep.subr.bf16.mxu0 0
    %1010 = vmatpush1.bf16.xpose.msra.mxu0 0
    %1011 = vmatprep.subr.bf16.mxu0 0
    %1012 = vmatpush1.bf16.xpose.msra.mxu0 0
    %1013 = vmatprep.subr.bf16.mxu0 0
    %1014 = vmatpush1.bf16.xpose.msra.mxu0 0
    %1015 = vmatprep.subr.bf16.mxu0 0
    %1016 = vmatpush1.bf16.xpose.msra.mxu0 0
    %1017 = vmatprep.subr.bf16.mxu0 0
    %1018 = vmatpush1.bf16.xpose.msra.mxu0 0
    %1019 = vmatprep.subr.bf16.mxu0 0
    %1020 = vmatpush1.bf16.xpose.msra.mxu0 0
    %1021 = vmatprep.subr.bf16.mxu0 0
    %1022 = vmatpush1.bf16.xpose.msra.mxu0 0
    %1023 = vmatprep.subr.bf16.mxu0 0
    %1024 = vmatpush1.bf16.xpose.msra.mxu0 0
    %1025 = vmatprep.subr.bf16.mxu0 0
    %1026 = vmatpush1.bf16.xpose.msra.mxu0 0
    %1027 = vmatprep.subr.bf16.mxu0 0
    %1028 = vmatpush1.bf16.xpose.msra.mxu0 0
    %1029 = vmatprep.subr.bf16.mxu0 0
    %1030 = vmatpush1.bf16.xpose.msra.mxu0 0
    %1031 = vmatprep.mubr.bf16.mxu0 0
    %1032 = vmatmul.mubr.bf16.gmra.mrb[0].mxu0 %v994
    %v1033 = vpop.f32.mrb[0].mxu0
    %v1034 = vadd.f32 0.0, %v1033
    %v1035 = vpop.f32.mrb[0].mxu0
    %v1036 = vpop.f32.mrb[0].mxu0
    %v1037 = vpop.f32.mrb[0].mxu0
    %1038 = vdwg.mxu0
    %v1039 = vsel %vm282, %v984, -inf
    %1040 = vmax.xlane.f32.xlu0 %v1039
    %v1041 = vpop.xlane.xlu0 %1040
    %v1042 = vsel %vm282, %v1034, -inf
    %1043 = vmax.xlane.f32.xlu0 %v1042
    %v1044 = vpop.xlane.xlu0 %1043
    %v1045 = vsub.f32 %v984, %v1041
    %v1046 = vsub.f32 %v1034, %v1044
    %v1047 = vmul.f32 %v1045, 1.442695
    %v1048 = vpow.pop %v1047
    %v1049 = vmul.f32 %v1046, 1.442695
    %v1050 = vpow.pop %v1049
    %v1051 = vsel %vm282, %v1048, 0.0
    %1052 = vadd.xlane.f32.xlu0 %v1051
    %v1053 = vpop.xlane.xlu0 %1052
    %v1054 = vsel %vm282, %v1050, 0.0
    %1055 = vadd.xlane.f32.xlu0 %v1054
    %v1056 = vpop.xlane.xlu0 %1055
    %v1057 = vrcp.pop %v1053
    %v1058 = vrcp.pop %v1056
    %v1059 = vmul.f32 %v1048, %v1057
    %v1060 = vmul.f32 %v1050, %v1058
    %v1061 = vpack.c.bf16 %v1059, %v1059
    %v1062 = vpack.c.bf16 %v1060, %v1060
    %1063 = vrot.lane.b32.xlu0 %v277, 40
    %v1064 = vpop.permute.xlu0 %1063
    %v1066 = vsel %vm282, %v1061, 0
    %v1069 = vsel %vm407, %v1064, 0
    %1071 = vmatprep.subr.bf16.mxu0 0
    %1072 = vmatpush1.bf16.msra.mxu0 %v1069
    %1073 = vmatprep.subr.bf16.mxu0 0
    %1074 = vmatpush1.bf16.msra.mxu0 0
    %1075 = vmatprep.subr.bf16.mxu0 0
    %1076 = vmatpush1.bf16.msra.mxu0 0
    %1077 = vmatprep.subr.bf16.mxu0 0
    %1078 = vmatpush1.bf16.msra.mxu0 0
    %1079 = vmatprep.subr.bf16.mxu0 0
    %1080 = vmatpush1.bf16.msra.mxu0 0
    %1081 = vmatprep.subr.bf16.mxu0 0
    %1082 = vmatpush1.bf16.msra.mxu0 0
    %1083 = vmatprep.subr.bf16.mxu0 0
    %1084 = vmatpush1.bf16.msra.mxu0 0
    %1085 = vmatprep.subr.bf16.mxu0 0
    %1086 = vmatpush1.bf16.msra.mxu0 0
    %1087 = vmatprep.subr.bf16.mxu0 0
    %1088 = vmatpush1.bf16.msra.mxu0 0
    %1089 = vmatprep.subr.bf16.mxu0 0
    %1090 = vmatpush1.bf16.msra.mxu0 0
    %1091 = vmatprep.subr.bf16.mxu0 0
    %1092 = vmatpush1.bf16.msra.mxu0 0
    %1093 = vmatprep.subr.bf16.mxu0 0
    %1094 = vmatpush1.bf16.msra.mxu0 0
    %1095 = vmatprep.subr.bf16.mxu0 0
    %1096 = vmatpush1.bf16.msra.mxu0 0
    %1097 = vmatprep.subr.bf16.mxu0 0
    %1098 = vmatpush1.bf16.msra.mxu0 0
    %1099 = vmatprep.subr.bf16.mxu0 0
    %1100 = vmatpush1.bf16.msra.mxu0 0
    %1101 = vmatprep.subr.bf16.mxu0 0
    %1102 = vmatpush1.bf16.msra.mxu0 0
    %1103 = vmatprep.mubr.bf16.mxu0 0
    %1104 = vmatmul.mubr.bf16.gmra.mrb[0].mxu0 %v1066
    %v1105 = vpop.f32.mrb[0].mxu0
    %v1106 = vadd.f32 0.0, %v1105
    %v1107 = vpop.f32.mrb[0].mxu0
    %v1108 = vpop.f32.mrb[0].mxu0
    %v1109 = vpop.f32.mrb[0].mxu0
    %1110 = vdwg.mxu0
    %1111 = vrot.lane.b32.xlu0 %v278, 40
    %v1112 = vpop.permute.xlu0 %1111
    %v1114 = vsel %vm282, %v1062, 0
    %v1117 = vsel %vm407, %v1112, 0
    %1119 = vmatprep.subr.bf16.mxu0 0
    %1120 = vmatpush1.bf16.msra.mxu0 %v1117
    %1121 = vmatprep.subr.bf16.mxu0 0
    %1122 = vmatpush1.bf16.msra.mxu0 0
    %1123 = vmatprep.subr.bf16.mxu0 0
    %1124 = vmatpush1.bf16.msra.mxu0 0
    %1125 = vmatprep.subr.bf16.mxu0 0
    %1126 = vmatpush1.bf16.msra.mxu0 0
    %1127 = vmatprep.subr.bf16.mxu0 0
    %1128 = vmatpush1.bf16.msra.mxu0 0
    %1129 = vmatprep.subr.bf16.mxu0 0
    %1130 = vmatpush1.bf16.msra.mxu0 0
    %1131 = vmatprep.subr.bf16.mxu0 0
    %1132 = vmatpush1.bf16.msra.mxu0 0
    %1133 = vmatprep.subr.bf16.mxu0 0
    %1134 = vmatpush1.bf16.msra.mxu0 0
    %1135 = vmatprep.subr.bf16.mxu0 0
    %1136 = vmatpush1.bf16.msra.mxu0 0
    %1137 = vmatprep.subr.bf16.mxu0 0
    %1138 = vmatpush1.bf16.msra.mxu0 0
    %1139 = vmatprep.subr.bf16.mxu0 0
    %1140 = vmatpush1.bf16.msra.mxu0 0
    %1141 = vmatprep.subr.bf16.mxu0 0
    %1142 = vmatpush1.bf16.msra.mxu0 0
    %1143 = vmatprep.subr.bf16.mxu0 0
    %1144 = vmatpush1.bf16.msra.mxu0 0
    %1145 = vmatprep.subr.bf16.mxu0 0
    %1146 = vmatpush1.bf16.msra.mxu0 0
    %1147 = vmatprep.subr.bf16.mxu0 0
    %1148 = vmatpush1.bf16.msra.mxu0 0
    %1149 = vmatprep.subr.bf16.mxu0 0
    %1150 = vmatpush1.bf16.msra.mxu0 0
    %1151 = vmatprep.mubr.bf16.mxu0 0
    %1152 = vmatmul.mubr.bf16.gmra.mrb[0].mxu0 %v1114
    %v1153 = vpop.f32.mrb[0].mxu0
    %v1154 = vadd.f32 0.0, %v1153
    %v1155 = vpop.f32.mrb[0].mxu0
    %v1156 = vpop.f32.mrb[0].mxu0
    %v1157 = vpop.f32.mrb[0].mxu0
    %1158 = vdwg.mxu0
    %1161 = vrot.lane.b32.xlu0 %v666, 8
    %v1162 = vpop.permute.xlu0 %1161
    %1163 = vrot.lane.b32.xlu0 %v714, 8
    %v1164 = vpop.permute.xlu0 %1163
    %1169 = vrot.lane.b32.xlu0 %v886, 16
    %v1170 = vpop.permute.xlu0 %1169
    %1171 = vrot.lane.b32.xlu0 %v934, 16
    %v1172 = vpop.permute.xlu0 %1171
    %1177 = vrot.lane.b32.xlu0 %v1106, 24
    %v1178 = vpop.permute.xlu0 %1177
    %1179 = vrot.lane.b32.xlu0 %v1154, 24
    %v1180 = vpop.permute.xlu0 %1179
    %v1183 = vsel %vm282, %v446, %v1162
    %v1184 = vsel %vm282, %v494, %v1164
    %vm1185 = vcmask 130048
    %v1186 = vsel %vm1185, %v1183, %v1170
    %v1187 = vsel %vm1185, %v1184, %v1172
    %vm1188 = vcmask 195584
    %v1189 = vsel %vm1188, %v1186, %v1178
    %v1190 = vsel %vm1188, %v1187, %v1180
    %v1191 = vpack.c.bf16 %v1190, %v1189
    %v1192 = vld [vmem:[#allocation8] sm:$0xf]
    %v1193 = vld [vmem:[#allocation8 + $0x4] sm:$0xf]
    %v1194 = vld [vmem:[#allocation8 + $0x8] sm:$0xf]
    %v1195 = vld [vmem:[#allocation8 + $0xc] sm:$0xf]
    %v1196 = vld [vmem:[#allocation10] sm:$0x1]
    %v1198 = vlaneseq
    %v1199 = vshrl.u32 %v1198, 7
    %v1200 = vsub.s32 0, %v1199
    %v1201 = vrot.slane %v1196, %v1200
    %v1207 = vunpack.c.l.b16 %v1192
    %v1208 = vunpack.c.l.b16 %v1193
    %v1209 = vunpack.c.l.b16 %v1194
    %v1210 = vunpack.c.l.b16 %v1195
    %v1211 = vpack.c.b16 %v1208, %v1207
    %v1212 = vpack.c.b16 %v1210, %v1209
    %v1216 = vsel %vm232, %v1191, 0
    %1218 = vmatprep.subr.bf16.mxu0 0
    %1219 = vmatpush1.bf16.msra.mxu0 %v1211
    %1220 = vmatprep.subr.bf16.mxu0 0
    %1221 = vmatpush1.bf16.msra.mxu0 %v1212
    %1222 = vmatprep.subr.bf16.mxu0 0
    %1223 = vmatpush1.bf16.msra.mxu0 0
    %1224 = vmatprep.subr.bf16.mxu0 0
    %1225 = vmatpush1.bf16.msra.mxu0 0
    %1226 = vmatprep.subr.bf16.mxu0 0
    %1227 = vmatpush1.bf16.msra.mxu0 0
    %1228 = vmatprep.subr.bf16.mxu0 0
    %1229 = vmatpush1.bf16.msra.mxu0 0
    %1230 = vmatprep.subr.bf16.mxu0 0
    %1231 = vmatpush1.bf16.msra.mxu0 0
    %1232 = vmatprep.subr.bf16.mxu0 0
    %1233 = vmatpush1.bf16.msra.mxu0 0
    %1234 = vmatprep.subr.bf16.mxu0 0
    %1235 = vmatpush1.bf16.msra.mxu0 0
    %1236 = vmatprep.subr.bf16.mxu0 0
    %1237 = vmatpush1.bf16.msra.mxu0 0
    %1238 = vmatprep.subr.bf16.mxu0 0
    %1239 = vmatpush1.bf16.msra.mxu0 0
    %1240 = vmatprep.subr.bf16.mxu0 0
    %1241 = vmatpush1.bf16.msra.mxu0 0
    %1242 = vmatprep.subr.bf16.mxu0 0
    %1243 = vmatpush1.bf16.msra.mxu0 0
    %1244 = vmatprep.subr.bf16.mxu0 0
    %1245 = vmatpush1.bf16.msra.mxu0 0
    %1246 = vmatprep.subr.bf16.mxu0 0
    %1247 = vmatpush1.bf16.msra.mxu0 0
    %1248 = vmatprep.subr.bf16.mxu0 0
    %1249 = vmatpush1.bf16.msra.mxu0 0
    %1250 = vmatprep.mubr.bf16.mxu0 0
    %1251 = vmatmul.mubr.bf16.gmra.mrb[0].mxu0 %v1216
    %v1252 = vpop.f32.mrb[0].mxu0
    %v1253 = vadd.f32 %v1201, %v1252
    %v1254 = vpop.f32.mrb[0].mxu0
    %v1255 = vpop.f32.mrb[0].mxu0
    %v1256 = vadd.f32 %v1201, %v1255
    %v1257 = vpop.f32.mrb[0].mxu0
    %1258 = vdwg.mxu0
    %v1259 = vadd.f32 %v206, %v1253
    %v1260 = vadd.f32 %v207, %v1256
    %v1261 = vsel %vm232, %v1259, 0.0
    %1262 = vadd.xlane.f32.xlu0 %v1261
    %v1263 = vpop.xlane.xlu0 %1262
    %v1264 = vsel %vm232, %v1260, 0.0
    %1265 = vadd.xlane.f32.xlu0 %v1264
    %v1266 = vpop.xlane.xlu0 %1265
    %v1267 = vrcp.pop 32.0
    %v1268 = vmul.f32 %v1263, %v1267
    %v1269 = vmul.f32 %v1266, %v1267
    %v1270 = vsub.f32 %v1259, %v1268
    %v1271 = vsub.f32 %v1260, %v1269
    %v1272 = vmul.f32 %v1270, %v1270
    %v1273 = vmul.f32 %v1271, %v1271
    %v1274 = vsel %vm232, %v1272, 0.0
    %1275 = vadd.xlane.f32.xlu0 %v1274
    %v1276 = vpop.xlane.xlu0 %1275
    %v1277 = vsel %vm232, %v1273, 0.0
    %1278 = vadd.xlane.f32.xlu0 %v1277
    %v1279 = vpop.xlane.xlu0 %1278
    %v1280 = vmul.f32 %v1276, %v1267
    %v1281 = vmul.f32 %v1279, %v1267
    %v1282 = vadd.f32 %v1280, 1e-05
    %v1283 = vadd.f32 %v1281, 1e-05
    %v1284 = vrsqrt.pop %v1282
    %v1285 = vrsqrt.pop %v1283
    %v1286 = vmul.f32 %v1270, %v1284
    %v1287 = vmul.f32 %v1271, %v1285
    %v1288 = vld [vmem:[#allocation11] sm:$0x1]
    %v1290 = vlaneseq
    %v1291 = vshrl.u32 %v1290, 7
    %v1292 = vsub.s32 0, %v1291
    %v1293 = vrot.slane %v1288, %v1292
    %v1295 = vmul.f32 %v1286, %v1293
    %v1296 = vmul.f32 %v1287, %v1293
    %v1297 = vld [vmem:[#allocation13] sm:$0x1]
    %v1299 = vlaneseq
    %v1300 = vshrl.u32 %v1299, 7
    %v1301 = vsub.s32 0, %v1300
    %v1302 = vrot.slane %v1297, %v1301
    %v1304 = vadd.f32 %v1295, %v1302
    %v1305 = vadd.f32 %v1296, %v1302
    %v1306 = vpack.c.bf16 %v1305, %v1304
    %v1307 = vld [vmem:[#allocation14] sm:$0xf]
    %v1308 = vld [vmem:[#allocation14 + $0x4] sm:$0xf]
    %v1309 = vld [vmem:[#allocation14 + $0x8] sm:$0xf]
    %v1310 = vld [vmem:[#allocation14 + $0xc] sm:$0xf]
    %v1311 = vld [vmem:[#allocation16] sm:$0x1]
    %v1313 = vlaneseq
    %v1314 = vshrl.u32 %v1313, 7
    %v1315 = vsub.s32 0, %v1314
    %v1316 = vrot.slane %v1311, %v1315
    %v1322 = vunpack.c.l.b16 %v1307
    %v1323 = vunpack.c.l.b16 %v1308
    %v1324 = vunpack.c.l.b16 %v1309
    %v1325 = vunpack.c.l.b16 %v1310
    %v1326 = vpack.c.b16 %v1323, %v1322
    %v1327 = vpack.c.b16 %v1325, %v1324
    %v1331 = vsel %vm232, %v1306, 0
    %1333 = vmatprep.subr.bf16.mxu0 0
    %1334 = vmatpush1.bf16.msra.mxu0 %v1326
    %1335 = vmatprep.subr.bf16.mxu0 0
    %1336 = vmatpush1.bf16.msra.mxu0 %v1327
    %1337 = vmatprep.subr.bf16.mxu0 0
    %1338 = vmatpush1.bf16.msra.mxu0 0
    %1339 = vmatprep.subr.bf16.mxu0 0
    %1340 = vmatpush1.bf16.msra.mxu0 0
    %1341 = vmatprep.subr.bf16.mxu0 0
    %1342 = vmatpush1.bf16.msra.mxu0 0
    %1343 = vmatprep.subr.bf16.mxu0 0
    %1344 = vmatpush1.bf16.msra.mxu0 0
    %1345 = vmatprep.subr.bf16.mxu0 0
    %1346 = vmatpush1.bf16.msra.mxu0 0
    %1347 = vmatprep.subr.bf16.mxu0 0
    %1348 = vmatpush1.bf16.msra.mxu0 0
    %1349 = vmatprep.subr.bf16.mxu0 0
    %1350 = vmatpush1.bf16.msra.mxu0 0
    %1351 = vmatprep.subr.bf16.mxu0 0
    %1352 = vmatpush1.bf16.msra.mxu0 0
    %1353 = vmatprep.subr.bf16.mxu0 0
    %1354 = vmatpush1.bf16.msra.mxu0 0
    %1355 = vmatprep.subr.bf16.mxu0 0
    %1356 = vmatpush1.bf16.msra.mxu0 0
    %1357 = vmatprep.subr.bf16.mxu0 0
    %1358 = vmatpush1.bf16.msra.mxu0 0
    %1359 = vmatprep.subr.bf16.mxu0 0
    %1360 = vmatpush1.bf16.msra.mxu0 0
    %1361 = vmatprep.subr.bf16.mxu0 0
    %1362 = vmatpush1.bf16.msra.mxu0 0
    %1363 = vmatprep.subr.bf16.mxu0 0
    %1364 = vmatpush1.bf16.msra.mxu0 0
    %1365 = vmatprep.mubr.bf16.mxu0 0
    %1366 = vmatmul.mubr.bf16.gmra.mrb[0].mxu0 %v1331
    %v1367 = vpop.f32.mrb[0].mxu0
    %v1368 = vadd.f32 %v1316, %v1367
    %v1369 = vpop.f32.mrb[0].mxu0
    %v1370 = vpop.f32.mrb[0].mxu0
    %v1371 = vadd.f32 %v1316, %v1370
    %v1372 = vpop.f32.mrb[0].mxu0
    %1373 = vdwg.mxu0
    %v1374 = vmax.f32 %v1368, 0.0
    %v1375 = vmax.f32 %v1371, 0.0
    %v1376 = vpack.c.bf16 %v1375, %v1374
    %v1377 = vld [vmem:[#allocation17] sm:$0xf]
    %v1378 = vld [vmem:[#allocation17 + $0x4] sm:$0xf]
    %v1379 = vld [vmem:[#allocation17 + $0x8] sm:$0xf]
    %v1380 = vld [vmem:[#allocation17 + $0xc] sm:$0xf]
    %v1381 = vld [vmem:[#allocation17 + $0x10] sm:$0xf]
    %v1382 = vld [vmem:[#allocation17 + $0x14] sm:$0xf]
    %v1383 = vld [vmem:[#allocation17 + $0x18] sm:$0xf]
    %v1384 = vld [vmem:[#allocation17 + $0x1c] sm:$0xf]
    %v1385 = vld [vmem:[#allocation17 + $0x20] sm:$0xf]
    %v1386 = vld [vmem:[#allocation17 + $0x24] sm:$0xf]
    %v1387 = vld [vmem:[#allocation17 + $0x28] sm:$0xf]
    %v1388 = vld [vmem:[#allocation17 + $0x2c] sm:$0xf]
    %v1389 = vld [vmem:[#allocation17 + $0x30] sm:$0xf]
    %v1390 = vld [vmem:[#allocation17 + $0x34] sm:$0xf]
    %v1391 = vld [vmem:[#allocation17 + $0x38] sm:$0xf]
    %v1392 = vld [vmem:[#allocation17 + $0x3c] sm:$0xf]
    %v1393 = vld [vmem:[#allocation19] sm:$0x1]
    %v1395 = vlaneseq
    %v1396 = vshrl.u32 %v1395, 7
    %v1397 = vsub.s32 0, %v1396
    %v1398 = vrot.slane %v1393, %v1397
    %v1416 = vunpack.c.l.b16 %v1377
    %v1417 = vunpack.c.l.b16 %v1378
    %v1418 = vunpack.c.l.b16 %v1379
    %v1419 = vunpack.c.l.b16 %v1380
    %v1420 = vunpack.c.l.b16 %v1381
    %v1421 = vunpack.c.l.b16 %v1382
    %v1422 = vunpack.c.l.b16 %v1383
    %v1423 = vunpack.c.l.b16 %v1384
    %v1424 = vunpack.c.l.b16 %v1385
    %v1425 = vunpack.c.l.b16 %v1386
    %v1426 = vunpack.c.l.b16 %v1387
    %v1427 = vunpack.c.l.b16 %v1388
    %v1428 = vunpack.c.l.b16 %v1389
    %v1429 = vunpack.c.l.b16 %v1390
    %v1430 = vunpack.c.l.b16 %v1391
    %v1431 = vunpack.c.l.b16 %v1392
    %v1432 = vpack.c.b16 %v1417, %v1416
    %v1433 = vpack.c.b16 %v1419, %v1418
    %v1434 = vpack.c.b16 %v1421, %v1420
    %v1435 = vpack.c.b16 %v1423, %v1422
    %v1436 = vpack.c.b16 %v1425, %v1424
    %v1437 = vpack.c.b16 %v1427, %v1426
    %v1438 = vpack.c.b16 %v1429, %v1428
    %v1439 = vpack.c.b16 %v1431, %v1430
    %1448 = vmatprep.subr.bf16.mxu0 0
    %1449 = vmatpush1.bf16.msra.mxu0 %v1432
    %1450 = vmatprep.subr.bf16.mxu0 0
    %1451 = vmatpush1.bf16.msra.mxu0 %v1433
    %1452 = vmatprep.subr.bf16.mxu0 0
    %1453 = vmatpush1.bf16.msra.mxu0 %v1434
    %1454 = vmatprep.subr.bf16.mxu0 0
    %1455 = vmatpush1.bf16.msra.mxu0 %v1435
    %1456 = vmatprep.subr.bf16.mxu0 0
    %1457 = vmatpush1.bf16.msra.mxu0 %v1436
    %1458 = vmatprep.subr.bf16.mxu0 0
    %1459 = vmatpush1.bf16.msra.mxu0 %v1437
    %1460 = vmatprep.subr.bf16.mxu0 0
    %1461 = vmatpush1.bf16.msra.mxu0 %v1438
    %1462 = vmatprep.subr.bf16.mxu0 0
    %1463 = vmatpush1.bf16.msra.mxu0 %v1439
    %1464 = vmatprep.subr.bf16.mxu0 0
    %1465 = vmatpush1.bf16.msra.mxu0 0
    %1466 = vmatprep.subr.bf16.mxu0 0
    %1467 = vmatpush1.bf16.msra.mxu0 0
    %1468 = vmatprep.subr.bf16.mxu0 0
    %1469 = vmatpush1.bf16.msra.mxu0 0
    %1470 = vmatprep.subr.bf16.mxu0 0
    %1471 = vmatpush1.bf16.msra.mxu0 0
    %1472 = vmatprep.subr.bf16.mxu0 0
    %1473 = vmatpush1.bf16.msra.mxu0 0
    %1474 = vmatprep.subr.bf16.mxu0 0
    %1475 = vmatpush1.bf16.msra.mxu0 0
    %1476 = vmatprep.subr.bf16.mxu0 0
    %1477 = vmatpush1.bf16.msra.mxu0 0
    %1478 = vmatprep.subr.bf16.mxu0 0
    %1479 = vmatpush1.bf16.msra.mxu0 0
    %1480 = vmatprep.mubr.bf16.mxu0 0
    %1481 = vmatmul.mubr.bf16.gmra.mrb[0].mxu0 %v1376
    %v1482 = vpop.f32.mrb[0].mxu0
    %v1483 = vadd.f32 %v1398, %v1482
    %v1484 = vpop.f32.mrb[0].mxu0
    %v1485 = vpop.f32.mrb[0].mxu0
    %v1486 = vadd.f32 %v1398, %v1485
    %v1487 = vpop.f32.mrb[0].mxu0
    %1488 = vdwg.mxu0
    %v1489 = vadd.f32 %v1304, %v1483
    %v1490 = vadd.f32 %v1305, %v1486
    %v1491 = vsel %vm232, %v1489, 0.0
    %1492 = vadd.xlane.f32.xlu0 %v1491
    %v1493 = vpop.xlane.xlu0 %1492
    %v1494 = vsel %vm232, %v1490, 0.0
    %1495 = vadd.xlane.f32.xlu0 %v1494
    %v1496 = vpop.xlane.xlu0 %1495
    %v1497 = vmul.f32 %v1493, %v1267
    %v1498 = vmul.f32 %v1496, %v1267
    %v1499 = vsub.f32 %v1489, %v1497
    %v1500 = vsub.f32 %v1490, %v1498
    %v1501 = vmul.f32 %v1499, %v1499
    %v1502 = vmul.f32 %v1500, %v1500
    %v1503 = vsel %vm232, %v1501, 0.0
    %1504 = vadd.xlane.f32.xlu0 %v1503
    %v1505 = vpop.xlane.xlu0 %1504
    %v1506 = vsel %vm232, %v1502, 0.0
    %1507 = vadd.xlane.f32.xlu0 %v1506
    %v1508 = vpop.xlane.xlu0 %1507
    %v1509 = vmul.f32 %v1505, %v1267
    %v1510 = vmul.f32 %v1508, %v1267
    %v1511 = vadd.f32 %v1509, 1e-05
    %v1512 = vadd.f32 %v1510, 1e-05
    %v1513 = vrsqrt.pop %v1511
    %v1514 = vrsqrt.pop %v1512
    %v1515 = vmul.f32 %v1499, %v1513
    %v1516 = vmul.f32 %v1500, %v1514
    %v1517 = vld [vmem:[#allocation20] sm:$0x1]
    %v1519 = vlaneseq
    %v1520 = vshrl.u32 %v1519, 7
    %v1521 = vsub.s32 0, %v1520
    %v1522 = vrot.slane %v1517, %v1521
    %v1524 = vmul.f32 %v1515, %v1522
    %v1525 = vmul.f32 %v1516, %v1522
    %v1526 = vld [vmem:[#allocation22] sm:$0x1]
    %v1528 = vlaneseq
    %v1529 = vshrl.u32 %v1528, 7
    %v1530 = vsub.s32 0, %v1529
    %v1531 = vrot.slane %v1526, %v1530
    %v1533 = vadd.f32 %v1524, %v1531
    %v1534 = vadd.f32 %v1525, %v1531
    %1535 = vst.msk [vmem:[#allocation23] sm:$0xff] %vm232, %v1533
    %1536 = vst.msk [vmem:[#allocation23 + $0x8] sm:$0xff] %vm232, %v1534
    // Predicated region
    $region106: #{tpu_custom_call.1} parent=1 // pred_check
      _
    $region107: #{tpu_custom_call.1} parent=1 // pred_check_branch
      %1538 = sbr.rel (0) target = $region109
    $region108: #{tpu_custom_call.1} parent=1 // pred_region
      %s1540 = ssub.s32 256, 256
      %1541 = vsyncadd [#allocation4], %s1540
      %s1542 = sshll.u32 [#allocation23], 4
      %s1543 = int_to_ptr.vmem [resolvable:$true] %s1542
      %1548 = dma.vmem_to_hbm [thread:$0]  %s1543, 256, %s13, [#allocation4], 128, 128, 8
    $region109: #{tpu_custom_call.1} parent=1 // pred_fallthru
      _
    // Predicated region
    $region110: #{tpu_custom_call.1} parent=1 // pred_check
      _
    $region111: #{tpu_custom_call.1} parent=1 // pred_check_branch
      %1550 = sbr.rel (0) target = $region113
    $region112: #{tpu_custom_call.1} parent=1 // pred_region
      %1551 = dma.done [#allocation4], 256
    $region113: #{tpu_custom_call.1} parent=1 // pred_fallthru
      _
    %1552 = vsyncpa [#allocation3], 1
    %1553 = vsyncpa [#allocation6], 1
    %1554 = vsyncpa [#allocation9], 1
    %1555 = vsyncpa [#allocation12], 1
    %1556 = vsyncpa [#allocation15], 1
    %1557 = vsyncpa [#allocation18], 1
    %1558 = vsyncpa [#allocation21], 1
    %1559 = vsyncpa [#allocation4], 1

</llo_original>
